<compile_context>
chip_gen: v6e
topology: v6e:2x2x1
jax: 0.10.0
libtpu: 0.0.40
codegen_flags: <defaults>
</compile_context>

<pallas_src>
import jax
import jax.numpy as jnp
import numpy as np
from jax.experimental import pallas as pl
from jax.experimental.pallas import tpu as pltpu


def _round_up(x, m):
    return (x + m - 1) // m * m


# ------------------------------ Pallas kernel -------------------------------- #
def _make_encoder_kernel(num_layers, V, GP, tm):
    """Fused embedding gather + stacked (bi)GRU cell, seq_len == 1, h0 == 0.

    Refs: ids (tm,1) int32, emb (V,E), then per layer (W, b, bh_n), out last.
    All gate blocks are GP(=multiple of 128)-lane wide so every slice below is
    vreg-aligned."""

    def kernel(ids_ref, emb_ref, *rest):
        out_ref = rest[-1]
        layer_refs = rest[:-1]

        # Embedding gather fused as one-hot(ids) @ table on the MXU.  The
        # table block index is constant across the grid, so it is DMA'd once.
        # TODO(synk): for large vocabularies replace this with a scalar-
        # prefetch / manual-DMA row gather so the lane-padded table never has
        # to be VMEM-resident (matters on v7x's 64 MiB VMEM).
        ids = ids_ref[...]                                        # (tm, 1) int32
        iota = jax.lax.broadcasted_iota(jnp.int32, (tm, V), 1)    # (tm, V)
        one_hot = (iota == ids).astype(jnp.float32)
        x = jnp.dot(one_hot, emb_ref[...],
                    preferred_element_type=jnp.float32)           # (tm, E)

        for l in range(num_layers):
            w_ref, b_ref, bhn_ref = layer_refs[3 * l: 3 * l + 3]
            # One fat MXU matmul per layer: r|z|n gates for both directions.
            # b_ref already folds b_ih + b_hh for r/z (and b_ih for n);
            # h0 == 0  =>  gh_* == b_hh_* exactly, so no hidden matmul.
            gi = jnp.dot(x, w_ref[...],
                         preferred_element_type=jnp.float32) + b_ref[...]
            r = jax.nn.sigmoid(gi[:, 0 * GP:1 * GP])              # vreg-aligned
            z = jax.nn.sigmoid(gi[:, 1 * GP:2 * GP])
            n = jnp.tanh(gi[:, 2 * GP:3 * GP] + r * bhn_ref[...])
            x = (1.0 - z) * n                 # + z*h0 term vanishes (h0 == 0)
            # Store immediately at a 128-lane-aligned offset: no concatenate,
            # and the layer's vregs die here instead of living to the end.
            out_ref[:, l * GP:(l + 1) * GP] = x

    return kernel


def encoder_forward_pallas(packed, encoder_input, hidden_size, num_layers,
                           bidirectional, *, block_tokens=128):
    """Matches Encoder.forward:
       output: (1, N, D*H)   hidden: (L*D, N, H) (layer-major, [fwd, bwd])."""
    D = 2 if bidirectional else 1
    H = hidden_size
    DH = D * H
    GP = packed["gate_pad"]
    emb = packed["embedding"]
    V, E = emb.shape

    ids = encoder_input.astype(jnp.int32).reshape(-1)
    N = ids.shape[0]
    tm = min(block_tokens, _round_up(N, 8))
    N_pad = _round_up(N, tm)
    ids = jnp.pad(ids, (0, N_pad - N)).reshape(N_pad, 1)          # pad rows -> id 0

    const = lambda i: (0, 0)                                      # resident blocks
    in_specs = [pl.BlockSpec((tm, 1), lambda i: (i, 0)),          # ids per block
                pl.BlockSpec((V, E), const)]                      # table, DMA'd once
    flat = []
    for (W, b, bh_n) in packed["layers"]:
        in_specs += [pl.BlockSpec(W.shape, const),
                     pl.BlockSpec(b.shape, const),
                     pl.BlockSpec(bh_n.shape, const)]
        flat += [W, b, bh_n]

    slab = pl.pallas_call(
        _make_encoder_kernel(num_layers, V, GP, tm),
        out_shape=jax.ShapeDtypeStruct((N_pad, num_layers * GP), jnp.float32),
        grid=(N_pad // tm,),
        in_specs=in_specs,
        out_specs=pl.BlockSpec((tm, num_layers * GP), lambda i: (i, 0)),
        compiler_params=pltpu.CompilerParams(
            dimension_semantics=("parallel",),        # both TCs on v7x
            vmem_limit_bytes=32 * 1024 * 1024),
    )(ids, emb, *flat)

    slab = slab[:N].reshape(N, num_layers, GP)[:, :, :DH]         # (N, L, D*H)
    output = slab[:, num_layers - 1, :][None]                     # (1, N, D*H)
    hidden = (slab.reshape(N, num_layers, D, H)
                  .transpose(1, 2, 0, 3)
                  .reshape(num_layers * D, N, H))                 # (L*D, N, H)
    return output, hidden


# --------------------- parameter init (PyTorch layout) ----------------------- #
def init_encoder_params(key, hidden_size, embedding_size, vocab_len,
                        num_layers, bidirectional):
    D = 2 if bidirectional else 1
    params = {}
    key, k_emb = jax.random.split(key)
    params["embedding"] = jax.random.normal(                      # nn.Embedding: N(0,1)
        k_emb, (vocab_len, embedding_size), jnp.float32)
    bound = 1.0 / np.sqrt(hidden_size)                            # nn.GRU: U(-1/sqrt(H), 1/sqrt(H))
    layers = []
    for l in range(num_layers):
        in_size = embedding_size if l == 0 else D * hidden_size
        dirs = []
        for _ in range(D):
            key, k1, k2, k3, k4 = jax.random.split(key, 5)
            w_ih = jax.random.uniform(k1, (3 * hidden_size, in_size),
                                      jnp.float32, -bound, bound)
            w_hh = jax.random.uniform(k2, (3 * hidden_size, hidden_size),
                                      jnp.float32, -bound, bound)
            b_ih = jax.random.uniform(k3, (3 * hidden_size,), jnp.float32, -bound, bound)
            b_hh = jax.random.uniform(k4, (3 * hidden_size,), jnp.float32, -bound, bound)
            dirs.append((w_ih, w_hh, b_ih, b_hh))
        layers.append(dirs)
    params["gru"] = layers
    return params


def pack_encoder_params(params, hidden_size, num_layers, bidirectional):
    """One-time packing: gate-major [R | Z | N], direction-minor [fwd, bwd],
    every gate block zero-padded to a 128-lane multiple (GP) so in-kernel
    slices are vreg-aligned.  W_hh dropped (h0 == 0 => 0 @ W_hh == 0), r/z
    biases pre-folded (b_ih + b_hh); only b_hh_n kept separate.
    Weights stay f32 here to keep the 1e-5 check tight; use bf16 on v6e/v7x
    to halve the (already small) weight DMA."""
    D = 2 if bidirectional else 1
    H = hidden_size
    DH = D * H
    GP = _round_up(DH, 128)
    E = params["embedding"].shape[1]

    layers = []
    for l in range(num_layers):
        in_size = E if l == 0 else DH
        in_pad = E if l == 0 else GP          # rows padded so x needs no slicing
        w_blocks, b_blocks = [], []
        for g in range(3):                                       # r, z, n
            w_g = jnp.concatenate(
                [params["gru"][l][d][0][g * H:(g + 1) * H, :].T for d in range(D)],
                axis=1)                                          # (in_size, D*H)
            w_blocks.append(jnp.pad(w_g, ((0, 0), (0, GP - DH))))
            if g < 2:                                            # fold b_ih + b_hh
                b_g = jnp.concatenate(
                    [params["gru"][l][d][2][g * H:(g + 1) * H]
                     + params["gru"][l][d][3][g * H:(g + 1) * H] for d in range(D)])
            else:                                                # n gate: b_ih only
                b_g = jnp.concatenate(
                    [params["gru"][l][d][2][g * H:(g + 1) * H] for d in range(D)])
            b_blocks.append(jnp.pad(b_g, (0, GP - DH)))
        W = jnp.concatenate(w_blocks, axis=1)                    # (in_size, 3*GP)
        W = jnp.pad(W, ((0, in_pad - in_size), (0, 0)))          # zero K rows
        b = jnp.concatenate(b_blocks)[None, :]                   # (1, 3*GP)
        bh_n = jnp.concatenate(
            [params["gru"][l][d][3][2 * H:3 * H] for d in range(D)])
        bh_n = jnp.pad(bh_n, (0, GP - DH))[None, :]              # (1, GP)
        layers.append((W, b, bh_n))
    return {"embedding": params["embedding"], "layers": layers, "gate_pad": GP}


# -------------------------- pure-JAX reference path -------------------------- #
def gru_cell_ref(x, h, w_ih, w_hh, b_ih, b_hh):
    H = h.shape[1]
    gi = x @ w_ih.T + b_ih
    gh = h @ w_hh.T + b_hh
    r = jax.nn.sigmoid(gi[:, :H] + gh[:, :H])
    z = jax.nn.sigmoid(gi[:, H:2 * H] + gh[:, H:2 * H])
    n = jnp.tanh(gi[:, 2 * H:] + r * gh[:, 2 * H:])
    return (1.0 - z) * n + z * h


def encoder_forward_ref(params, encoder_input, hidden_size, num_layers,
                        bidirectional):
    D = 2 if bidirectional else 1
    ids = encoder_input.astype(jnp.int32)
    embedded = jnp.take(params["embedding"], ids, axis=0)          # (N, E)
    N = embedded.shape[0]
    layer_input = embedded
    hiddens = []
    for l in range(num_layers):
        outs = []
        for d in range(D):
            w_ih, w_hh, b_ih, b_hh = params["gru"][l][d]
            h0 = jnp.zeros((N, hidden_size), jnp.float32)
            h1 = gru_cell_ref(layer_input, h0, w_ih, w_hh, b_ih, b_hh)
            outs.append(h1)
            hiddens.append(h1)
        layer_input = jnp.concatenate(outs, axis=-1) if D == 2 else outs[0]
    return layer_input[None], jnp.stack(hiddens, axis=0)


# ------------------------------------ main ------------------------------------ #
if __name__ == "__main__":
    hidden_size = 32
    embedding_size = 16
    vocab_len = 50
    num_layers = 2
    bidirectional = True
    N = 256          # tokens (= GRU batch dim after unsqueeze(0)); 2 grid blocks

    key = jax.random.PRNGKey(0)
    key, k_ids = jax.random.split(key)
    encoder_input = jax.random.randint(k_ids, (N,), 0, vocab_len, dtype=jnp.int32)

    params = init_encoder_params(key, hidden_size, embedding_size, vocab_len,
                                 num_layers, bidirectional)
    packed = pack_encoder_params(params, hidden_size, num_layers, bidirectional)

    output, hidden = encoder_forward_pallas(packed, encoder_input, hidden_size,
                                            num_layers, bidirectional,
                                            block_tokens=128)
    jax.block_until_ready((output, hidden))

    # Cross-check against the pure-JAX reference implementation.
    output_ref, hidden_ref = encoder_forward_ref(params, encoder_input,
                                                 hidden_size, num_layers,
                                                 bidirectional)
    D = 2 if bidirectional else 1
    assert output.shape == (1, N, D * hidden_size)
    assert hidden.shape == (num_layers * D, N, hidden_size)
    np.testing.assert_allclose(np.asarray(output), np.asarray(output_ref),
                               rtol=1e-5, atol=1e-5)
    np.testing.assert_allclose(np.asarray(hidden), np.asarray(hidden_ref),
                               rtol=1e-5, atol=1e-5)
    print("KERNEL_OK")
</pallas_src>

<mosaic_0001>
module attributes {stable_mosaic.version = 11 : i64} {
  func.func @kernel(%arg0: i32, %arg1: memref<128x1xi32, #tpu.memory_space<vmem>>, %arg2: memref<50x16xf32, #tpu.memory_space<vmem>>, %arg3: memref<16x384xf32, #tpu.memory_space<vmem>>, %arg4: memref<1x384xf32, #tpu.memory_space<vmem>>, %arg5: memref<1x128xf32, #tpu.memory_space<vmem>>, %arg6: memref<128x384xf32, #tpu.memory_space<vmem>>, %arg7: memref<1x384xf32, #tpu.memory_space<vmem>>, %arg8: memref<1x128xf32, #tpu.memory_space<vmem>>, %arg9: memref<128x256xf32, #tpu.memory_space<vmem>>) attributes {dimension_semantics = [#tpu.dimension_semantics<parallel>], iteration_bounds = array<i64: 2>, scalar_prefetch = 0 : i64, scratch_operands = 0 : i64, tpu.core_type = #tpu.core_type<tc>, window_params = [{transform_indices = @transform_0, window_bounds = array<i64: 128, 1>}, {pipeline_mode = #tpu.pipeline_mode<synchronous>, transform_indices = @transform_1, window_bounds = array<i64: 50, 16>}, {pipeline_mode = #tpu.pipeline_mode<synchronous>, transform_indices = @transform_2, window_bounds = array<i64: 16, 384>}, {pipeline_mode = #tpu.pipeline_mode<synchronous>, transform_indices = @transform_3, window_bounds = array<i64: 1, 384>}, {pipeline_mode = #tpu.pipeline_mode<synchronous>, transform_indices = @transform_4, window_bounds = array<i64: 1, 128>}, {pipeline_mode = #tpu.pipeline_mode<synchronous>, transform_indices = @transform_5, window_bounds = array<i64: 128, 384>}, {pipeline_mode = #tpu.pipeline_mode<synchronous>, transform_indices = @transform_6, window_bounds = array<i64: 1, 384>}, {pipeline_mode = #tpu.pipeline_mode<synchronous>, transform_indices = @transform_7, window_bounds = array<i64: 1, 128>}, {transform_indices = @transform_8, window_bounds = array<i64: 128, 256>}]} {
    %c0 = arith.constant 0 : index
    %c0_0 = arith.constant 0 : index
    %0 = vector.load %arg1[%c0, %c0_0] : memref<128x1xi32, #tpu.memory_space<vmem>>, vector<128x1xi32>
    %1 = tpu.iota {dimensions = array<i32: 1>} : vector<128x50xi32>
    %2 = vector.broadcast %0 : vector<128x1xi32> to vector<128x50xi32>
    %3 = arith.cmpi eq, %1, %2 : vector<128x50xi32>
    %4 = arith.extui %3 : vector<128x50xi1> to vector<128x50xi32>
    %5 = arith.sitofp %4 : vector<128x50xi32> to vector<128x50xf32>
    %c0_1 = arith.constant 0 : index
    %c0_2 = arith.constant 0 : index
    %6 = vector.load %arg2[%c0_1, %c0_2] : memref<50x16xf32, #tpu.memory_space<vmem>>, vector<50x16xf32>
    %cst = arith.constant dense<0.000000e+00> : vector<128x16xf32>
    %7 = tpu.matmul %5, %6, %cst {dimension_numbers = #tpu.dot_dimension_numbers<[1], [0], [0], [1], [0, 0, 1, 1], [], []>} : vector<128x50xf32>, vector<50x16xf32>, vector<128x16xf32> -> vector<128x16xf32>
    %c0_3 = arith.constant 0 : index
    %c0_4 = arith.constant 0 : index
    %8 = vector.load %arg3[%c0_3, %c0_4] : memref<16x384xf32, #tpu.memory_space<vmem>>, vector<16x384xf32>
    %cst_5 = arith.constant dense<0.000000e+00> : vector<128x384xf32>
    %9 = tpu.matmul %7, %8, %cst_5 {dimension_numbers = #tpu.dot_dimension_numbers<[1], [0], [0], [1], [0, 0, 1, 1], [], []>} : vector<128x16xf32>, vector<16x384xf32>, vector<128x384xf32> -> vector<128x384xf32>
    %c0_6 = arith.constant 0 : index
    %c0_7 = arith.constant 0 : index
    %10 = vector.load %arg4[%c0_6, %c0_7] : memref<1x384xf32, #tpu.memory_space<vmem>>, vector<1x384xf32>
    %11 = vector.broadcast %10 : vector<1x384xf32> to vector<128x384xf32>
    %12 = arith.addf %9, %11 : vector<128x384xf32>
    %13 = vector.extract_strided_slice %12 {offsets = [0, 0], sizes = [128, 128], strides = [1, 1]} : vector<128x384xf32> to vector<128x128xf32>
    %14 = arith.negf %13 : vector<128x128xf32>
    %15 = math.exp %14 : vector<128x128xf32>
    %cst_8 = arith.constant 1.000000e+00 : f32
    %16 = vector.broadcast %cst_8 : f32 to vector<128x128xf32>
    %17 = arith.addf %16, %15 : vector<128x128xf32>
    %18 = arith.divf %16, %17 : vector<128x128xf32>
    %19 = vector.extract_strided_slice %12 {offsets = [0, 128], sizes = [128, 128], strides = [1, 1]} : vector<128x384xf32> to vector<128x128xf32>
    %20 = arith.negf %19 : vector<128x128xf32>
    %21 = math.exp %20 : vector<128x128xf32>
    %cst_9 = arith.constant 1.000000e+00 : f32
    %22 = vector.broadcast %cst_9 : f32 to vector<128x128xf32>
    %23 = arith.addf %22, %21 : vector<128x128xf32>
    %24 = arith.divf %22, %23 : vector<128x128xf32>
    %25 = vector.extract_strided_slice %12 {offsets = [0, 256], sizes = [128, 128], strides = [1, 1]} : vector<128x384xf32> to vector<128x128xf32>
    %c0_10 = arith.constant 0 : index
    %c0_11 = arith.constant 0 : index
    %26 = vector.load %arg5[%c0_10, %c0_11] : memref<1x128xf32, #tpu.memory_space<vmem>>, vector<1x128xf32>
    %27 = vector.broadcast %26 : vector<1x128xf32> to vector<128x128xf32>
    %28 = arith.mulf %18, %27 : vector<128x128xf32>
    %29 = arith.addf %25, %28 : vector<128x128xf32>
    %30 = math.tanh %29 : vector<128x128xf32>
    %cst_12 = arith.constant 1.000000e+00 : f32
    %31 = vector.broadcast %cst_12 : f32 to vector<128x128xf32>
    %32 = arith.subf %31, %24 : vector<128x128xf32>
    %33 = arith.mulf %32, %30 : vector<128x128xf32>
    %c0_13 = arith.constant 0 : index
    %c0_14 = arith.constant 0 : index
    %34 = vector.load %arg9[%c0_13, %c0_14] : memref<128x256xf32, #tpu.memory_space<vmem>>, vector<128x128xf32>
    tpu.vector_store %arg9[%c0_13, %c0_14], %33 {strides = array<i32>} : memref<128x256xf32, #tpu.memory_space<vmem>>, vector<128x128xf32>,
    %c0_15 = arith.constant 0 : index
    %c0_16 = arith.constant 0 : index
    %35 = vector.load %arg6[%c0_15, %c0_16] : memref<128x384xf32, #tpu.memory_space<vmem>>, vector<128x384xf32>
    %cst_17 = arith.constant dense<0.000000e+00> : vector<128x384xf32>
    %36 = tpu.matmul %33, %35, %cst_17 {dimension_numbers = #tpu.dot_dimension_numbers<[1], [0], [0], [1], [0, 0, 1, 1], [], []>} : vector<128x128xf32>, vector<128x384xf32>, vector<128x384xf32> -> vector<128x384xf32>
    %c0_18 = arith.constant 0 : index
    %c0_19 = arith.constant 0 : index
    %37 = vector.load %arg7[%c0_18, %c0_19] : memref<1x384xf32, #tpu.memory_space<vmem>>, vector<1x384xf32>
    %38 = vector.broadcast %37 : vector<1x384xf32> to vector<128x384xf32>
    %39 = arith.addf %36, %38 : vector<128x384xf32>
    %40 = vector.extract_strided_slice %39 {offsets = [0, 0], sizes = [128, 128], strides = [1, 1]} : vector<128x384xf32> to vector<128x128xf32>
    %41 = arith.negf %40 : vector<128x128xf32>
    %42 = math.exp %41 : vector<128x128xf32>
    %cst_20 = arith.constant 1.000000e+00 : f32
    %43 = vector.broadcast %cst_20 : f32 to vector<128x128xf32>
    %44 = arith.addf %43, %42 : vector<128x128xf32>
    %45 = arith.divf %43, %44 : vector<128x128xf32>
    %46 = vector.extract_strided_slice %39 {offsets = [0, 128], sizes = [128, 128], strides = [1, 1]} : vector<128x384xf32> to vector<128x128xf32>
    %47 = arith.negf %46 : vector<128x128xf32>
    %48 = math.exp %47 : vector<128x128xf32>
    %cst_21 = arith.constant 1.000000e+00 : f32
    %49 = vector.broadcast %cst_21 : f32 to vector<128x128xf32>
    %50 = arith.addf %49, %48 : vector<128x128xf32>
    %51 = arith.divf %49, %50 : vector<128x128xf32>
    %52 = vector.extract_strided_slice %39 {offsets = [0, 256], sizes = [128, 128], strides = [1, 1]} : vector<128x384xf32> to vector<128x128xf32>
    %c0_22 = arith.constant 0 : index
    %c0_23 = arith.constant 0 : index
    %53 = vector.load %arg8[%c0_22, %c0_23] : memref<1x128xf32, #tpu.memory_space<vmem>>, vector<1x128xf32>
    %54 = vector.broadcast %53 : vector<1x128xf32> to vector<128x128xf32>
    %55 = arith.mulf %45, %54 : vector<128x128xf32>
    %56 = arith.addf %52, %55 : vector<128x128xf32>
    %57 = math.tanh %56 : vector<128x128xf32>
    %cst_24 = arith.constant 1.000000e+00 : f32
    %58 = vector.broadcast %cst_24 : f32 to vector<128x128xf32>
    %59 = arith.subf %58, %51 : vector<128x128xf32>
    %60 = arith.mulf %59, %57 : vector<128x128xf32>
    %c0_25 = arith.constant 0 : index
    %c128 = arith.constant 128 : index
    %61 = vector.load %arg9[%c0_25, %c128] : memref<128x256xf32, #tpu.memory_space<vmem>>, vector<128x128xf32>
    tpu.vector_store %arg9[%c0_25, %c128], %60 {strides = array<i32>} : memref<128x256xf32, #tpu.memory_space<vmem>>, vector<128x128xf32>,
    return
  }
  func.func @transform_0(%arg0: i32) -> (i32, i32) {
    %c0_i32 = arith.constant 0 : i32
    %c0_i32_0 = arith.constant 0 : i32
    return %arg0, %c0_i32 : i32, i32
  }
  func.func @transform_1(%arg0: i32) -> (i32, i32) {
    %c0_i32 = arith.constant 0 : i32
    %c0_i32_0 = arith.constant 0 : i32
    %c0_i32_1 = arith.constant 0 : i32
    return %c0_i32, %c0_i32_0 : i32, i32
  }
  func.func @transform_2(%arg0: i32) -> (i32, i32) {
    %c0_i32 = arith.constant 0 : i32
    %c0_i32_0 = arith.constant 0 : i32
    %c0_i32_1 = arith.constant 0 : i32
    return %c0_i32, %c0_i32_0 : i32, i32
  }
  func.func @transform_3(%arg0: i32) -> (i32, i32) {
    %c0_i32 = arith.constant 0 : i32
    %c0_i32_0 = arith.constant 0 : i32
    %c0_i32_1 = arith.constant 0 : i32
    return %c0_i32, %c0_i32_0 : i32, i32
  }
  func.func @transform_4(%arg0: i32) -> (i32, i32) {
    %c0_i32 = arith.constant 0 : i32
    %c0_i32_0 = arith.constant 0 : i32
    %c0_i32_1 = arith.constant 0 : i32
    return %c0_i32, %c0_i32_0 : i32, i32
  }
  func.func @transform_5(%arg0: i32) -> (i32, i32) {
    %c0_i32 = arith.constant 0 : i32
    %c0_i32_0 = arith.constant 0 : i32
    %c0_i32_1 = arith.constant 0 : i32
    return %c0_i32, %c0_i32_0 : i32, i32
  }
  func.func @transform_6(%arg0: i32) -> (i32, i32) {
    %c0_i32 = arith.constant 0 : i32
    %c0_i32_0 = arith.constant 0 : i32
    %c0_i32_1 = arith.constant 0 : i32
    return %c0_i32, %c0_i32_0 : i32, i32
  }
  func.func @transform_7(%arg0: i32) -> (i32, i32) {
    %c0_i32 = arith.constant 0 : i32
    %c0_i32_0 = arith.constant 0 : i32
    %c0_i32_1 = arith.constant 0 : i32
    return %c0_i32, %c0_i32_0 : i32, i32
  }
  func.func @transform_8(%arg0: i32) -> (i32, i32) {
    %c0_i32 = arith.constant 0 : i32
    %c0_i32_0 = arith.constant 0 : i32
    return %arg0, %c0_i32 : i32, i32
  }
}

</mosaic_0001>

<llo_original>
// kernel: tpu_custom_call.1
$region0: #{tpu_custom_call.1}
  #allocation0 [shape = 'u32[]', space=smem, size = 0x4, offset = 0x4, fixed_abs, tag = 'smem constant byte address 0x4 - core index']
  #allocation1 [shape = 'u32[144,128]{1,0:T(1,128)}', space=vmem, size = 0x12000, scoped, tag = 'internal scratch']
  %s0 = inlined_call_operand.vmem [shape: s32[256,1], index: 0, kind: input, shape index: {}]
  %s1 = inlined_call_operand.vmem [shape: f32[50,16], index: 1, kind: input, shape index: {}]
  %s2 = inlined_call_operand.vmem [shape: f32[16,384], index: 2, kind: input, shape index: {}]
  %s3 = inlined_call_operand.vmem [shape: f32[1,384], index: 3, kind: input, shape index: {}]
  %s4 = inlined_call_operand.vmem [shape: f32[1,128], index: 4, kind: input, shape index: {}]
  %s5 = inlined_call_operand.hbm [shape: f32[128,384], index: 5, kind: input, shape index: {}]
  %s6 = inlined_call_operand.vmem [shape: f32[1,384], index: 6, kind: input, shape index: {}]
  %s7 = inlined_call_operand.vmem [shape: f32[1,128], index: 7, kind: input, shape index: {}]
  %s8 = inlined_call_operand.hbm [shape: f32[256,256], index: 8, kind: output, shape index: {}]
  %s9 = sld [smem:[#allocation0]]
  $region69: #{tpu_custom_call.1} parent=0
    _
  %s11 = ssub.s32 1, %s9
  %s12 = scalar_select 0, %s11, %s9
  $region1: #{tpu_custom_call.1} parent=0
    #allocation2 [shape = 'u8[196608]{0}', space=vmem, size = 0x30000, scoped, tag = 'input window, operand 5, single buffered']
    #allocation3 [shape = 's32[2]{0}', space=sflag, size = 0x8, scoped, tag = 'scoped memory for tpu_custom_call.1']
    #allocation4 [shape = 's32[2]{0}', space=sflag, size = 0x8, scoped, tag = 'scoped memory for tpu_custom_call.1']
    #allocation5 [shape = 'u8[262144]{0}', space=vmem, size = 0x40000, scoped, tag = 'output window, operand 0']
    %13 = vsyncpa [#allocation3], 0
    %14 = vsyncpa [#allocation4], 0
    %s15 = scalar_lea.sflag [#allocation4], 1
    %16 = vsyncpa %s15, 0
    loop: start=0, step=1, limit=4
    $region2: #{tpu_custom_call.1} parent=1 // loop_pre_header
      _
    $region3: #{tpu_custom_call.1} parent=1 // loop_header
      %s18 = sphi 0, %s22
      %p19 = scmp.ge.s32.totalorder %s18, 4
      %s28 = sphi 0, %s30
      %s31 = sphi 0, %s28
      %s32 = sphi 0, %s31
      %s48 = sphi 0, %s32
      %s52 = sphi 0, %s52
      %s54 = sphi 0, %s52
      %s55 = sphi 0, %s54
      %s69 = sphi 0, %s55
      %s73 = sphi 0, %s73
      %s75 = sphi 0, %s73
      %s76 = sphi 0, %s75
      %s90 = sphi 0, %s76
      %s94 = sphi 0, %s94
      %s96 = sphi 0, %s94
      %s97 = sphi 0, %s96
      %s111 = sphi 0, %s97
      %s115 = sphi 0, %s115
      %s117 = sphi 0, %s115
      %s118 = sphi 0, %s117
      %s132 = sphi 0, %s118
      %s136 = sphi 0, %s136
      %s138 = sphi 0, %s136
      %s139 = sphi 0, %s138
      %s153 = sphi 0, %s139
      %s157 = sphi 0, %s157
      %s159 = sphi 0, %s157
      %s160 = sphi 0, %s159
      %s174 = sphi 0, %s160
      %s178 = sphi 0, %s178
      %s180 = sphi 0, %s178
      %s181 = sphi 0, %s180
      %s195 = sphi 0, %s181
      %s201 = sphi 0, %s203
      %s204 = sphi 0, %s201
      %s205 = sphi 0, %s204
      %s221 = sphi 0, %s205
    $region4: #{tpu_custom_call.1} parent=1 // loop_header_branch
      %21 = sbr.rel (%p19) target = $region8
    $region5: #{tpu_custom_call.1} parent=1 // loop_body
      %s23 = ssub.s32 %s18, 1
      %s24 = ssub.s32 %s18, 2
      %s25 = sadd.s32 %s18, 1
      %s26 = ssub.s32 %s18, %s25
      %p27 = scmp.eq.s32.totalorder %s26, 0
      %s29 = sadd.s32 %s28, 1
      %s30 = scalar_select %p27, %s28, %s29
      %p33 = pneg %p27
      %p34 = scmp.eq.s32.totalorder %s18, 1
      %p35 = por %p33, %p34
      %p36 = scmp.ne.s32.totalorder %s28, %s31
      %p37 = scmp.eq.s32.totalorder %s18, 0
      %p38 = por %p36, %p37
      %p39 = scmp.ne.s32.totalorder %s28, %s31
      %p40 = scmp.eq.s32.totalorder %s23, 1
      %p41 = por %p39, %p40
      %p42 = scmp.ne.s32.totalorder %s31, %s32
      %p43 = scmp.eq.s32.totalorder %s23, 0
      %p44 = por %p42, %p43
      %p45 = scmp.ne.s32.totalorder %s31, %s32
      %p46 = scmp.eq.s32.totalorder %s24, 1
      %p47 = por %p45, %p46
      %p49 = scmp.ne.s32.totalorder %s32, %s48
      %p50 = scmp.eq.s32.totalorder %s24, 0
      %p51 = por %p49, %p50
      %s53 = sadd.s32 %s52, 1
      %p56 = scmp.eq.s32.totalorder %s18, 1
      %p57 = scmp.ne.s32.totalorder %s52, %s54
      %p58 = scmp.eq.s32.totalorder %s18, 0
      %p59 = por %p57, %p58
      %p60 = scmp.ne.s32.totalorder %s52, %s54
      %p61 = scmp.eq.s32.totalorder %s23, 1
      %p62 = por %p60, %p61
      %p63 = scmp.ne.s32.totalorder %s54, %s55
      %p64 = scmp.eq.s32.totalorder %s23, 0
      %p65 = por %p63, %p64
      %p66 = scmp.ne.s32.totalorder %s54, %s55
      %p67 = scmp.eq.s32.totalorder %s24, 1
      %p68 = por %p66, %p67
      %p70 = scmp.ne.s32.totalorder %s55, %s69
      %p71 = scmp.eq.s32.totalorder %s24, 0
      %p72 = por %p70, %p71
      %s74 = sadd.s32 %s73, 1
      %p77 = scmp.eq.s32.totalorder %s18, 1
      %p78 = scmp.ne.s32.totalorder %s73, %s75
      %p79 = scmp.eq.s32.totalorder %s18, 0
      %p80 = por %p78, %p79
      %p81 = scmp.ne.s32.totalorder %s73, %s75
      %p82 = scmp.eq.s32.totalorder %s23, 1
      %p83 = por %p81, %p82
      %p84 = scmp.ne.s32.totalorder %s75, %s76
      %p85 = scmp.eq.s32.totalorder %s23, 0
      %p86 = por %p84, %p85
      %p87 = scmp.ne.s32.totalorder %s75, %s76
      %p88 = scmp.eq.s32.totalorder %s24, 1
      %p89 = por %p87, %p88
      %p91 = scmp.ne.s32.totalorder %s76, %s90
      %p92 = scmp.eq.s32.totalorder %s24, 0
      %p93 = por %p91, %p92
      %s95 = sadd.s32 %s94, 1
      %p98 = scmp.eq.s32.totalorder %s18, 1
      %p99 = scmp.ne.s32.totalorder %s94, %s96
      %p100 = scmp.eq.s32.totalorder %s18, 0
      %p101 = por %p99, %p100
      %p102 = scmp.ne.s32.totalorder %s94, %s96
      %p103 = scmp.eq.s32.totalorder %s23, 1
      %p104 = por %p102, %p103
      %p105 = scmp.ne.s32.totalorder %s96, %s97
      %p106 = scmp.eq.s32.totalorder %s23, 0
      %p107 = por %p105, %p106
      %p108 = scmp.ne.s32.totalorder %s96, %s97
      %p109 = scmp.eq.s32.totalorder %s24, 1
      %p110 = por %p108, %p109
      %p112 = scmp.ne.s32.totalorder %s97, %s111
      %p113 = scmp.eq.s32.totalorder %s24, 0
      %p114 = por %p112, %p113
      %s116 = sadd.s32 %s115, 1
      %p119 = scmp.eq.s32.totalorder %s18, 1
      %p120 = scmp.ne.s32.totalorder %s115, %s117
      %p121 = scmp.eq.s32.totalorder %s18, 0
      %p122 = por %p120, %p121
      %p123 = scmp.ne.s32.totalorder %s115, %s117
      %p124 = scmp.eq.s32.totalorder %s23, 1
      %p125 = por %p123, %p124
      %p126 = scmp.ne.s32.totalorder %s117, %s118
      %p127 = scmp.eq.s32.totalorder %s23, 0
      %p128 = por %p126, %p127
      %p129 = scmp.ne.s32.totalorder %s117, %s118
      %p130 = scmp.eq.s32.totalorder %s24, 1
      %p131 = por %p129, %p130
      %p133 = scmp.ne.s32.totalorder %s118, %s132
      %p134 = scmp.eq.s32.totalorder %s24, 0
      %p135 = por %p133, %p134
      %s137 = sadd.s32 %s136, 1
      %p140 = scmp.eq.s32.totalorder %s18, 1
      %p141 = scmp.ne.s32.totalorder %s136, %s138
      %p142 = scmp.eq.s32.totalorder %s18, 0
      %p143 = por %p141, %p142
      %p144 = scmp.ne.s32.totalorder %s136, %s138
      %p145 = scmp.eq.s32.totalorder %s23, 1
      %p146 = por %p144, %p145
      %p147 = scmp.ne.s32.totalorder %s138, %s139
      %p148 = scmp.eq.s32.totalorder %s23, 0
      %p149 = por %p147, %p148
      %p150 = scmp.ne.s32.totalorder %s138, %s139
      %p151 = scmp.eq.s32.totalorder %s24, 1
      %p152 = por %p150, %p151
      %p154 = scmp.ne.s32.totalorder %s139, %s153
      %p155 = scmp.eq.s32.totalorder %s24, 0
      %p156 = por %p154, %p155
      %s158 = sadd.s32 %s157, 1
      %p161 = scmp.eq.s32.totalorder %s18, 1
      %p162 = scmp.ne.s32.totalorder %s157, %s159
      %p163 = scmp.eq.s32.totalorder %s18, 0
      %p164 = por %p162, %p163
      %p165 = scmp.ne.s32.totalorder %s157, %s159
      %p166 = scmp.eq.s32.totalorder %s23, 1
      %p167 = por %p165, %p166
      %p168 = scmp.ne.s32.totalorder %s159, %s160
      %p169 = scmp.eq.s32.totalorder %s23, 0
      %p170 = por %p168, %p169
      %p171 = scmp.ne.s32.totalorder %s159, %s160
      %p172 = scmp.eq.s32.totalorder %s24, 1
      %p173 = por %p171, %p172
      %p175 = scmp.ne.s32.totalorder %s160, %s174
      %p176 = scmp.eq.s32.totalorder %s24, 0
      %p177 = por %p175, %p176
      %s179 = sadd.s32 %s178, 1
      %p182 = scmp.eq.s32.totalorder %s18, 1
      %p183 = scmp.ne.s32.totalorder %s178, %s180
      %p184 = scmp.eq.s32.totalorder %s18, 0
      %p185 = por %p183, %p184
      %p186 = scmp.ne.s32.totalorder %s178, %s180
      %p187 = scmp.eq.s32.totalorder %s23, 1
      %p188 = por %p186, %p187
      %p189 = scmp.ne.s32.totalorder %s180, %s181
      %p190 = scmp.eq.s32.totalorder %s23, 0
      %p191 = por %p189, %p190
      %p192 = scmp.ne.s32.totalorder %s180, %s181
      %p193 = scmp.eq.s32.totalorder %s24, 1
      %p194 = por %p192, %p193
      %p196 = scmp.ne.s32.totalorder %s181, %s195
      %p197 = scmp.eq.s32.totalorder %s24, 0
      %p198 = por %p196, %p197
      %s199 = ssub.s32 %s18, %s25
      %p200 = scmp.eq.s32.totalorder %s199, 0
      %s202 = sadd.s32 %s201, 1
      %s203 = scalar_select %p200, %s201, %s202
      %p206 = pneg %p200
      %p207 = scmp.eq.s32.totalorder %s18, 1
      %p208 = por %p206, %p207
      %p209 = scmp.ne.s32.totalorder %s201, %s204
      %p210 = scmp.eq.s32.totalorder %s18, 0
      %p211 = por %p209, %p210
      %p212 = scmp.ne.s32.totalorder %s201, %s204
      %p213 = scmp.eq.s32.totalorder %s23, 1
      %p214 = por %p212, %p213
      %p215 = scmp.ne.s32.totalorder %s204, %s205
      %p216 = scmp.eq.s32.totalorder %s23, 0
      %p217 = por %p215, %p216
      %p218 = scmp.ne.s32.totalorder %s204, %s205
      %p219 = scmp.eq.s32.totalorder %s24, 1
      %p220 = por %p218, %p219
      %p222 = scmp.ne.s32.totalorder %s205, %s221
      %p223 = scmp.eq.s32.totalorder %s24, 0
      %p224 = por %p222, %p223
      %p225 = scmp.le.s32.totalorder 1, %s18
      %p226 = scmp.lt.s32.totalorder %s18, 3
      %p227 = pnand %p225, %p226
      %p228 = pneg %p227
      // Predicated region
      $region9: #{tpu_custom_call.1} parent=5 // pred_check
        _
      $region10: #{tpu_custom_call.1} parent=5 // pred_check_branch
        %230 = sbr.rel (%p227) target = $region12
      $region11: #{tpu_custom_call.1} parent=5 // pred_region
        %s231 = ssub.s32 %s18, 1
        // Predicated region
        $region13: #{tpu_custom_call.1} parent=11 // pred_check
          %p232 = pneg %p65
        $region14: #{tpu_custom_call.1} parent=11 // pred_check_branch
          %234 = sbr.rel (%p232) target = $region16
        $region15: #{tpu_custom_call.1} parent=11 // pred_region
          _
        $region16: #{tpu_custom_call.1} parent=11 // pred_fallthru
          _
        // Predicated region
        $region17: #{tpu_custom_call.1} parent=11 // pred_check
          %p235 = pneg %p86
        $region18: #{tpu_custom_call.1} parent=11 // pred_check_branch
          %237 = sbr.rel (%p235) target = $region20
        $region19: #{tpu_custom_call.1} parent=11 // pred_region
          _
        $region20: #{tpu_custom_call.1} parent=11 // pred_fallthru
          _
        // Predicated region
        $region21: #{tpu_custom_call.1} parent=11 // pred_check
          %p238 = pneg %p107
        $region22: #{tpu_custom_call.1} parent=11 // pred_check_branch
          %240 = sbr.rel (%p238) target = $region24
        $region23: #{tpu_custom_call.1} parent=11 // pred_region
          _
        $region24: #{tpu_custom_call.1} parent=11 // pred_fallthru
          _
        // Predicated region
        $region25: #{tpu_custom_call.1} parent=11 // pred_check
          %p241 = pneg %p128
        $region26: #{tpu_custom_call.1} parent=11 // pred_check_branch
          %243 = sbr.rel (%p241) target = $region28
        $region27: #{tpu_custom_call.1} parent=11 // pred_region
          _
        $region28: #{tpu_custom_call.1} parent=11 // pred_fallthru
          _
        // Predicated region
        $region29: #{tpu_custom_call.1} parent=11 // pred_check
          %p244 = pneg %p149
        $region30: #{tpu_custom_call.1} parent=11 // pred_check_branch
          %246 = sbr.rel (%p244) target = $region32
        $region31: #{tpu_custom_call.1} parent=11 // pred_region
          %s248 = ssub.s32 6144, 6144
          %249 = vsyncadd [#allocation3], %s248
          %s250 = sshll.u32 [#allocation2], 4
          %s251 = int_to_ptr.vmem [resolvable:$true] %s250
          %256 = dma.hbm_to_vmem [thread:$0]  %s5, 6144, %s251, [#allocation3], 384, 384, 24
        $region32: #{tpu_custom_call.1} parent=11 // pred_fallthru
          _
        // Predicated region
        $region33: #{tpu_custom_call.1} parent=11 // pred_check
          %p257 = pneg %p170
        $region34: #{tpu_custom_call.1} parent=11 // pred_check_branch
          %259 = sbr.rel (%p257) target = $region36
        $region35: #{tpu_custom_call.1} parent=11 // pred_region
          _
        $region36: #{tpu_custom_call.1} parent=11 // pred_fallthru
          _
        // Predicated region
        $region37: #{tpu_custom_call.1} parent=11 // pred_check
          %p260 = pneg %p191
        $region38: #{tpu_custom_call.1} parent=11 // pred_check_branch
          %262 = sbr.rel (%p260) target = $region40
        $region39: #{tpu_custom_call.1} parent=11 // pred_region
          _
        $region40: #{tpu_custom_call.1} parent=11 // pred_fallthru
          _
      $region12: #{tpu_custom_call.1} parent=5 // pred_fallthru
        _
      %p263 = scmp.lt.s32.totalorder %s18, 2
      // Predicated region
      $region41: #{tpu_custom_call.1} parent=5 // pred_check
        %p264 = pneg %p263
      $region42: #{tpu_custom_call.1} parent=5 // pred_check_branch
        %266 = sbr.rel (%p264) target = $region44
      $region43: #{tpu_custom_call.1} parent=5 // pred_region
        // Predicated region
        $region45: #{tpu_custom_call.1} parent=43 // pred_check
          %p267 = pneg %p38
        $region46: #{tpu_custom_call.1} parent=43 // pred_check_branch
          %269 = sbr.rel (%p267) target = $region48
        $region47: #{tpu_custom_call.1} parent=43 // pred_region
          %s270 = smul.u32 16, %s18
          %p271 = scmp.lt.s32.totalorder %s270, 31
          %s272 = scalar_select %p271, %s270, 31
          %s273 = smul.addr %s272, 8
          %s274 = scalar_lea.vmem %s0, %s273
          %s275 = smul.u32 16, %s18
        $region48: #{tpu_custom_call.1} parent=43 // pred_fallthru
          _
      $region44: #{tpu_custom_call.1} parent=5 // pred_fallthru
        _
      %p276 = scmp.le.s32.totalorder 1, %s18
      %p277 = scmp.lt.s32.totalorder %s18, 3
      %p278 = pnand %p276, %p277
      %p279 = pneg %p278
      // Predicated region
      $region49: #{tpu_custom_call.1} parent=5 // pred_check
        _
      $region50: #{tpu_custom_call.1} parent=5 // pred_check_branch
        %281 = sbr.rel (%p278) target = $region52
      $region51: #{tpu_custom_call.1} parent=5 // pred_region
        %s282 = ssub.s32 %s18, 1
        // Predicated region
        $region53: #{tpu_custom_call.1} parent=51 // pred_check
          %p283 = pneg %p149
        $region54: #{tpu_custom_call.1} parent=51 // pred_check_branch
          %285 = sbr.rel (%p283) target = $region56
        $region55: #{tpu_custom_call.1} parent=51 // pred_region
          %286 = dma.done [#allocation3], 6144
        $region56: #{tpu_custom_call.1} parent=51 // pred_fallthru
          _
        %s287 = smul.u32 16, %s23
        %p288 = scmp.lt.s32.totalorder %s287, 31
        %s289 = scalar_select %p288, %s287, 31
        %s290 = smul.addr %s289, 8
        %s291 = scalar_lea.vmem %s0, %s290
        %p292 = pneg %p44
        %p293 = pneg %p41
        %p294 = pneg %p65
        %p295 = pneg %p62
        %p296 = pneg %p86
        %p297 = pneg %p83
        %p298 = pneg %p107
        %p299 = pneg %p104
        %p300 = pneg %p128
        %p301 = pneg %p125
        %p302 = pneg %p149
        %p303 = pneg %p146
        %p304 = pneg %p170
        %p305 = pneg %p167
        %p306 = pneg %p191
        %p307 = pneg %p188
        %p308 = pneg %p217
        %p309 = pneg %p214
        %s310 = sand.u32 %s204, 1
        %s311 = scalar_lea.sflag [#allocation4], %s310
        %s312 = sand.u32 %s204, 1
        %s313 = smul.addr %s312, 256
        %s314 = scalar_lea.vmem [#allocation5], %s313
        %s315 = smul.u32 16, %s23
        %p316 = scmp.lt.s32.totalorder %s315, 31
        %s317 = scalar_select %p316, %s315, 31
        %s318 = smul.addr %s317, 8
        %s319 = scalar_lea.vmem %s0, %s318
        %s320 = smul.u32 16, %s23
        %s321 = smul.u32 16, %s23
        %v322 = vld [vmem:[%s319] sm:$0xff]
        %v323 = vld [vmem:[%s319 + $0x8] sm:$0xff]
        %v324 = vld [vmem:[%s319 + $0x10] sm:$0xff]
        %v325 = vld [vmem:[%s319 + $0x18] sm:$0xff]
        %v326 = vld [vmem:[%s319 + $0x20] sm:$0xff]
        %v327 = vld [vmem:[%s319 + $0x28] sm:$0xff]
        %v328 = vld [vmem:[%s319 + $0x30] sm:$0xff]
        %v329 = vld [vmem:[%s319 + $0x38] sm:$0xff]
        %v330 = vld [vmem:[%s319 + $0x40] sm:$0xff]
        %v331 = vld [vmem:[%s319 + $0x48] sm:$0xff]
        %v332 = vld [vmem:[%s319 + $0x50] sm:$0xff]
        %v333 = vld [vmem:[%s319 + $0x58] sm:$0xff]
        %v334 = vld [vmem:[%s319 + $0x60] sm:$0xff]
        %v335 = vld [vmem:[%s319 + $0x68] sm:$0xff]
        %v336 = vld [vmem:[%s319 + $0x70] sm:$0xff]
        %v337 = vld [vmem:[%s319 + $0x78] sm:$0xff]
        %v338 = vlaneseq
        %v339 = vand.u32 %v338, 127
        %340 = vset.pattern.permute.xlu0 0
        %341 = vperm.xlu0 %340, %v322
        %v342 = vpop.permute.xlu0 %341
        %343 = vset.pattern.permute.xlu0 0
        %344 = vperm.xlu0 %343, %v323
        %v345 = vpop.permute.xlu0 %344
        %346 = vset.pattern.permute.xlu0 0
        %347 = vperm.xlu0 %346, %v324
        %v348 = vpop.permute.xlu0 %347
        %349 = vset.pattern.permute.xlu0 0
        %350 = vperm.xlu0 %349, %v325
        %v351 = vpop.permute.xlu0 %350
        %352 = vset.pattern.permute.xlu0 0
        %353 = vperm.xlu0 %352, %v326
        %v354 = vpop.permute.xlu0 %353
        %355 = vset.pattern.permute.xlu0 0
        %356 = vperm.xlu0 %355, %v327
        %v357 = vpop.permute.xlu0 %356
        %358 = vset.pattern.permute.xlu0 0
        %359 = vperm.xlu0 %358, %v328
        %v360 = vpop.permute.xlu0 %359
        %361 = vset.pattern.permute.xlu0 0
        %362 = vperm.xlu0 %361, %v329
        %v363 = vpop.permute.xlu0 %362
        %364 = vset.pattern.permute.xlu0 0
        %365 = vperm.xlu0 %364, %v330
        %v366 = vpop.permute.xlu0 %365
        %367 = vset.pattern.permute.xlu0 0
        %368 = vperm.xlu0 %367, %v331
        %v369 = vpop.permute.xlu0 %368
        %370 = vset.pattern.permute.xlu0 0
        %371 = vperm.xlu0 %370, %v332
        %v372 = vpop.permute.xlu0 %371
        %373 = vset.pattern.permute.xlu0 0
        %374 = vperm.xlu0 %373, %v333
        %v375 = vpop.permute.xlu0 %374
        %376 = vset.pattern.permute.xlu0 0
        %377 = vperm.xlu0 %376, %v334
        %v378 = vpop.permute.xlu0 %377
        %379 = vset.pattern.permute.xlu0 0
        %380 = vperm.xlu0 %379, %v335
        %v381 = vpop.permute.xlu0 %380
        %382 = vset.pattern.permute.xlu0 0
        %383 = vperm.xlu0 %382, %v336
        %v384 = vpop.permute.xlu0 %383
        %385 = vset.pattern.permute.xlu0 0
        %386 = vperm.xlu0 %385, %v337
        %v387 = vpop.permute.xlu0 %386
        %vm388 = vcmp.eq.s32.totalorder %v339, %v342
        %vm389 = vcmp.eq.s32.totalorder %v339, %v345
        %vm390 = vcmp.eq.s32.totalorder %v339, %v348
        %vm391 = vcmp.eq.s32.totalorder %v339, %v351
        %vm392 = vcmp.eq.s32.totalorder %v339, %v354
        %vm393 = vcmp.eq.s32.totalorder %v339, %v357
        %vm394 = vcmp.eq.s32.totalorder %v339, %v360
        %vm395 = vcmp.eq.s32.totalorder %v339, %v363
        %vm396 = vcmp.eq.s32.totalorder %v339, %v366
        %vm397 = vcmp.eq.s32.totalorder %v339, %v369
        %vm398 = vcmp.eq.s32.totalorder %v339, %v372
        %vm399 = vcmp.eq.s32.totalorder %v339, %v375
        %vm400 = vcmp.eq.s32.totalorder %v339, %v378
        %vm401 = vcmp.eq.s32.totalorder %v339, %v381
        %vm402 = vcmp.eq.s32.totalorder %v339, %v384
        %vm403 = vcmp.eq.s32.totalorder %v339, %v387
        %v404 = vsel %vm388, 1, 0
        %v405 = vsel %vm389, 1, 0
        %v406 = vsel %vm390, 1, 0
        %v407 = vsel %vm391, 1, 0
        %v408 = vsel %vm392, 1, 0
        %v409 = vsel %vm393, 1, 0
        %v410 = vsel %vm394, 1, 0
        %v411 = vsel %vm395, 1, 0
        %v412 = vsel %vm396, 1, 0
        %v413 = vsel %vm397, 1, 0
        %v414 = vsel %vm398, 1, 0
        %v415 = vsel %vm399, 1, 0
        %v416 = vsel %vm400, 1, 0
        %v417 = vsel %vm401, 1, 0
        %v418 = vsel %vm402, 1, 0
        %v419 = vsel %vm403, 1, 0
        %v420 = vcvt.s32.f32 %v404
        %v421 = vcvt.s32.f32 %v405
        %v422 = vcvt.s32.f32 %v406
        %v423 = vcvt.s32.f32 %v407
        %v424 = vcvt.s32.f32 %v408
        %v425 = vcvt.s32.f32 %v409
        %v426 = vcvt.s32.f32 %v410
        %v427 = vcvt.s32.f32 %v411
        %v428 = vcvt.s32.f32 %v412
        %v429 = vcvt.s32.f32 %v413
        %v430 = vcvt.s32.f32 %v414
        %v431 = vcvt.s32.f32 %v415
        %v432 = vcvt.s32.f32 %v416
        %v433 = vcvt.s32.f32 %v417
        %v434 = vcvt.s32.f32 %v418
        %v435 = vcvt.s32.f32 %v419
        %v436 = vld [vmem:[%s1] sm:$0xff]
        %v437 = vld [vmem:[%s1 + $0x8] sm:$0xff]
        %v438 = vld [vmem:[%s1 + $0x10] sm:$0xff]
        %v439 = vld [vmem:[%s1 + $0x18] sm:$0xff]
        %v440 = vld [vmem:[%s1 + $0x20] sm:$0xff]
        %v441 = vld [vmem:[%s1 + $0x28] sm:$0xff]
        %v442 = vld [vmem:[%s1 + $0x30] sm:$0x3]
        %vm443 = vcmask 408576
        %v445 = vsel %vm443, %v420, 0
        %v448 = vsel %vm443, %v421, 0
        %v451 = vsel %vm443, %v422, 0
        %v454 = vsel %vm443, %v423, 0
        %v457 = vsel %vm443, %v424, 0
        %v460 = vsel %vm443, %v425, 0
        %v463 = vsel %vm443, %v426, 0
        %v466 = vsel %vm443, %v427, 0
        %v469 = vsel %vm443, %v428, 0
        %v472 = vsel %vm443, %v429, 0
        %v475 = vsel %vm443, %v430, 0
        %v478 = vsel %vm443, %v431, 0
        %v481 = vsel %vm443, %v432, 0
        %v484 = vsel %vm443, %v433, 0
        %v487 = vsel %vm443, %v434, 0
        %v490 = vsel %vm443, %v435, 0
        %vm492 = vcmask 1041408
        %v494 = vsel %vm492, %v442, 0
        %496 = vmatprep.subr.mxu0 0.0
        %497 = vmatpush1.msra.mxu0 0.0
        %498 = vmatprep.subr.mxu0 0.0
        %499 = vmatpush1.msra.mxu0 0.0
        %500 = vmatprep.subr.mxu0 0.0
        %501 = vmatpush1.msra.mxu0 0.0
        %502 = vmatprep.subr.mxu0 0.0
        %503 = vmatpush1.msra.mxu0 0.0
        %504 = vmatprep.subr.mxu0 0.0
        %505 = vmatpush1.msra.mxu0 0.0
        %506 = vmatprep.subr.mxu0 0.0
        %507 = vmatpush1.msra.mxu0 0.0
        %508 = vmatprep.subr.mxu0 0.0
        %509 = vmatpush1.msra.mxu0 0.0
        %510 = vmatprep.subr.mxu0 0.0
        %511 = vmatpush1.msra.mxu0 0.0
        %512 = vmatprep.subr.mxu0 0.0
        %513 = vmatpush1.msra.mxu0 0.0
        %514 = vmatprep.subr.mxu0 0.0
        %515 = vmatpush1.msra.mxu0 %v494
        %516 = vmatprep.subr.mxu0 0.0
        %517 = vmatpush1.msra.mxu0 %v441
        %518 = vmatprep.subr.mxu0 0.0
        %519 = vmatpush1.msra.mxu0 %v440
        %520 = vmatprep.subr.mxu0 0.0
        %521 = vmatpush1.msra.mxu0 %v439
        %522 = vmatprep.subr.mxu0 0.0
        %523 = vmatpush1.msra.mxu0 %v438
        %524 = vmatprep.subr.mxu0 0.0
        %525 = vmatpush1.msra.mxu0 %v437
        %526 = vmatprep.subr.mxu0 0.0
        %527 = vmatpush1.msra.mxu0 %v436
        %528 = vmatprep.subr.mxu0 0.0
        %529 = vmatpush2.msra.mxu0 0.0
        %530 = vmatprep.subr.mxu0 0.0
        %531 = vmatpush2.msra.mxu0 0.0
        %532 = vmatprep.subr.mxu0 0.0
        %533 = vmatpush2.msra.mxu0 0.0
        %534 = vmatprep.subr.mxu0 0.0
        %535 = vmatpush2.msra.mxu0 0.0
        %536 = vmatprep.subr.mxu0 0.0
        %537 = vmatpush2.msra.mxu0 0.0
        %538 = vmatprep.subr.mxu0 0.0
        %539 = vmatpush2.msra.mxu0 0.0
        %540 = vmatprep.subr.mxu0 0.0
        %541 = vmatpush2.msra.mxu0 0.0
        %542 = vmatprep.subr.mxu0 0.0
        %543 = vmatpush2.msra.mxu0 0.0
        %544 = vmatprep.subr.mxu0 0.0
        %545 = vmatpush2.msra.mxu0 0.0
        %546 = vmatprep.subr.mxu0 0.0
        %547 = vmatpush2.msra.mxu0 0.0
        %548 = vmatprep.subr.mxu0 0.0
        %549 = vmatpush2.msra.mxu0 0.0
        %550 = vmatprep.subr.mxu0 0.0
        %551 = vmatpush2.msra.mxu0 0.0
        %552 = vmatprep.subr.mxu0 0.0
        %553 = vmatpush2.msra.mxu0 0.0
        %554 = vmatprep.subr.mxu0 0.0
        %555 = vmatpush2.msra.mxu0 0.0
        %556 = vmatprep.subr.mxu0 0.0
        %557 = vmatpush2.msra.mxu0 0.0
        %558 = vmatprep.subr.mxu0 0.0
        %559 = vmatpush2.msra.mxu0 0.0
        %560 = vmatprep.mubr.f32.mxu0 0.0
        %561 = vmatmul.mubr.f32.gmra.mxu0 %v445
        %v562 = vpop.f32.mrf.mxu0
        %v563 = vadd.f32 0.0, %v562
        %v564 = vpop.f32.mrf.mxu0
        %565 = vmatprep.mubr.f32.mxu0 0.0
        %566 = vmatmul.mubr.f32.gmra.mxu0 %v448
        %v567 = vpop.f32.mrf.mxu0
        %v568 = vadd.f32 0.0, %v567
        %v569 = vpop.f32.mrf.mxu0
        %570 = vmatprep.mubr.f32.mxu0 0.0
        %571 = vmatmul.mubr.f32.gmra.mxu0 %v451
        %v572 = vpop.f32.mrf.mxu0
        %v573 = vadd.f32 0.0, %v572
        %v574 = vpop.f32.mrf.mxu0
        %575 = vmatprep.mubr.f32.mxu0 0.0
        %576 = vmatmul.mubr.f32.gmra.mxu0 %v454
        %v577 = vpop.f32.mrf.mxu0
        %v578 = vadd.f32 0.0, %v577
        %v579 = vpop.f32.mrf.mxu0
        %580 = vmatprep.mubr.f32.mxu0 0.0
        %581 = vmatmul.mubr.f32.gmra.mxu0 %v457
        %v582 = vpop.f32.mrf.mxu0
        %v583 = vadd.f32 0.0, %v582
        %v584 = vpop.f32.mrf.mxu0
        %585 = vmatprep.mubr.f32.mxu0 0.0
        %586 = vmatmul.mubr.f32.gmra.mxu0 %v460
        %v587 = vpop.f32.mrf.mxu0
        %v588 = vadd.f32 0.0, %v587
        %v589 = vpop.f32.mrf.mxu0
        %590 = vmatprep.mubr.f32.mxu0 0.0
        %591 = vmatmul.mubr.f32.gmra.mxu0 %v463
        %v592 = vpop.f32.mrf.mxu0
        %v593 = vadd.f32 0.0, %v592
        %v594 = vpop.f32.mrf.mxu0
        %595 = vmatprep.mubr.f32.mxu0 0.0
        %596 = vmatmul.mubr.f32.gmra.mxu0 %v466
        %v597 = vpop.f32.mrf.mxu0
        %v598 = vadd.f32 0.0, %v597
        %v599 = vpop.f32.mrf.mxu0
        %600 = vmatprep.mubr.f32.mxu0 0.0
        %601 = vmatmul.mubr.f32.gmra.mxu0 %v469
        %v602 = vpop.f32.mrf.mxu0
        %v603 = vadd.f32 0.0, %v602
        %v604 = vpop.f32.mrf.mxu0
        %605 = vmatprep.mubr.f32.mxu0 0.0
        %606 = vmatmul.mubr.f32.gmra.mxu0 %v472
        %v607 = vpop.f32.mrf.mxu0
        %v608 = vadd.f32 0.0, %v607
        %v609 = vpop.f32.mrf.mxu0
        %610 = vmatprep.mubr.f32.mxu0 0.0
        %611 = vmatmul.mubr.f32.gmra.mxu0 %v475
        %v612 = vpop.f32.mrf.mxu0
        %v613 = vadd.f32 0.0, %v612
        %v614 = vpop.f32.mrf.mxu0
        %615 = vmatprep.mubr.f32.mxu0 0.0
        %616 = vmatmul.mubr.f32.gmra.mxu0 %v478
        %v617 = vpop.f32.mrf.mxu0
        %v618 = vadd.f32 0.0, %v617
        %v619 = vpop.f32.mrf.mxu0
        %620 = vmatprep.mubr.f32.mxu0 0.0
        %621 = vmatmul.mubr.f32.gmra.mxu0 %v481
        %v622 = vpop.f32.mrf.mxu0
        %v623 = vadd.f32 0.0, %v622
        %v624 = vpop.f32.mrf.mxu0
        %625 = vmatprep.mubr.f32.mxu0 0.0
        %626 = vmatmul.mubr.f32.gmra.mxu0 %v484
        %v627 = vpop.f32.mrf.mxu0
        %v628 = vadd.f32 0.0, %v627
        %v629 = vpop.f32.mrf.mxu0
        %630 = vmatprep.mubr.f32.mxu0 0.0
        %631 = vmatmul.mubr.f32.gmra.mxu0 %v487
        %v632 = vpop.f32.mrf.mxu0
        %v633 = vadd.f32 0.0, %v632
        %v634 = vpop.f32.mrf.mxu0
        %635 = vmatprep.mubr.f32.mxu0 0.0
        %636 = vmatmul.mubr.f32.gmra.mxu0 %v490
        %v637 = vpop.f32.mrf.mxu0
        %v638 = vadd.f32 0.0, %v637
        %v639 = vpop.f32.mrf.mxu0
        %640 = vdwg.mxu0
        %v641 = vld [vmem:[%s2] sm:$0xff]
        %v642 = vld [vmem:[%s2 + $0x8] sm:$0xff]
        %v643 = vld [vmem:[%s2 + $0x10] sm:$0xff]
        %v644 = vld [vmem:[%s2 + $0x18] sm:$0xff]
        %v645 = vld [vmem:[%s2 + $0x20] sm:$0xff]
        %v646 = vld [vmem:[%s2 + $0x28] sm:$0xff]
        %v647 = vld [vmem:[%s3] sm:$0x7]
        %v649 = vlaneseq
        %v650 = vshrl.u32 %v649, 7
        %v651 = vsub.s32 0, %v650
        %v652 = vrot.slane %v647, %v651
        %v653 = vlaneseq
        %v654 = vshrl.u32 %v653, 7
        %v655 = vsub.s32 1, %v654
        %v656 = vrot.slane %v647, %v655
        %v657 = vlaneseq
        %v658 = vshrl.u32 %v657, 7
        %v659 = vsub.s32 2, %v658
        %v660 = vrot.slane %v647, %v659
        %vm664 = vcmask 130048
        %v666 = vsel %vm664, %v563, 0
        %v669 = vsel %vm664, %v568, 0
        %v672 = vsel %vm664, %v573, 0
        %v675 = vsel %vm664, %v578, 0
        %v678 = vsel %vm664, %v583, 0
        %v681 = vsel %vm664, %v588, 0
        %v684 = vsel %vm664, %v593, 0
        %v687 = vsel %vm664, %v598, 0
        %v690 = vsel %vm664, %v603, 0
        %v693 = vsel %vm664, %v608, 0
        %v696 = vsel %vm664, %v613, 0
        %v699 = vsel %vm664, %v618, 0
        %v702 = vsel %vm664, %v623, 0
        %v705 = vsel %vm664, %v628, 0
        %v708 = vsel %vm664, %v633, 0
        %v711 = vsel %vm664, %v638, 0
        %713 = vmatprep.subr.mxu0 0.0
        %714 = vmatpush1.msra.mxu0 0.0
        %715 = vmatprep.subr.mxu0 0.0
        %716 = vmatpush1.msra.mxu0 0.0
        %717 = vmatprep.subr.mxu0 0.0
        %718 = vmatpush1.msra.mxu0 0.0
        %719 = vmatprep.subr.mxu0 0.0
        %720 = vmatpush1.msra.mxu0 0.0
        %721 = vmatprep.subr.mxu0 0.0
        %722 = vmatpush1.msra.mxu0 0.0
        %723 = vmatprep.subr.mxu0 0.0
        %724 = vmatpush1.msra.mxu0 0.0
        %725 = vmatprep.subr.mxu0 0.0
        %726 = vmatpush1.msra.mxu0 0.0
        %727 = vmatprep.subr.mxu0 0.0
        %728 = vmatpush1.msra.mxu0 0.0
        %729 = vmatprep.subr.mxu0 0.0
        %730 = vmatpush1.msra.mxu0 0.0
        %731 = vmatprep.subr.mxu0 0.0
        %732 = vmatpush1.msra.mxu0 0.0
        %733 = vmatprep.subr.mxu0 0.0
        %734 = vmatpush1.msra.mxu0 0.0
        %735 = vmatprep.subr.mxu0 0.0
        %736 = vmatpush1.msra.mxu0 0.0
        %737 = vmatprep.subr.mxu0 0.0
        %738 = vmatpush1.msra.mxu0 0.0
        %739 = vmatprep.subr.mxu0 0.0
        %740 = vmatpush1.msra.mxu0 0.0
        %741 = vmatprep.subr.mxu0 %v645
        %742 = vmatpush1.msra.mxu0 %v644
        %743 = vmatprep.subr.mxu0 %v642
        %744 = vmatpush1.msra.mxu0 %v641
        %745 = vmatprep.subr.mxu0 0.0
        %746 = vmatpush2.msra.mxu0 0.0
        %747 = vmatprep.subr.mxu0 0.0
        %748 = vmatpush2.msra.mxu0 0.0
        %749 = vmatprep.subr.mxu0 0.0
        %750 = vmatpush2.msra.mxu0 0.0
        %751 = vmatprep.subr.mxu0 0.0
        %752 = vmatpush2.msra.mxu0 0.0
        %753 = vmatprep.subr.mxu0 0.0
        %754 = vmatpush2.msra.mxu0 0.0
        %755 = vmatprep.subr.mxu0 0.0
        %756 = vmatpush2.msra.mxu0 0.0
        %757 = vmatprep.subr.mxu0 0.0
        %758 = vmatpush2.msra.mxu0 0.0
        %759 = vmatprep.subr.mxu0 0.0
        %760 = vmatpush2.msra.mxu0 0.0
        %761 = vmatprep.subr.mxu0 0.0
        %762 = vmatpush2.msra.mxu0 0.0
        %763 = vmatprep.subr.mxu0 0.0
        %764 = vmatpush2.msra.mxu0 0.0
        %765 = vmatprep.subr.mxu0 0.0
        %766 = vmatpush2.msra.mxu0 0.0
        %767 = vmatprep.subr.mxu0 0.0
        %768 = vmatpush2.msra.mxu0 0.0
        %769 = vmatprep.subr.mxu0 0.0
        %770 = vmatpush2.msra.mxu0 0.0
        %771 = vmatprep.subr.mxu0 0.0
        %772 = vmatpush2.msra.mxu0 0.0
        %773 = vmatprep.subr.mxu0 0.0
        %774 = vmatpush2.msra.mxu0 0.0
        %775 = vmatprep.subr.mxu0 0.0
        %776 = vmatpush2.msra.mxu0 0.0
        %777 = vmatprep.mubr.f32.mxu0 0.0
        %778 = vmatmul.mubr.f32.gmra.mxu0 %v666
        %v779 = vpop.f32.mrf.mxu0
        %v780 = vadd.f32 %v652, %v779
        %v781 = vpop.f32.mrf.mxu0
        %v782 = vadd.f32 %v656, %v781
        %783 = vmatprep.mubr.f32.mxu0 0.0
        %784 = vmatmul.mubr.f32.gmra.mxu0 %v669
        %v785 = vpop.f32.mrf.mxu0
        %v786 = vadd.f32 %v652, %v785
        %v787 = vpop.f32.mrf.mxu0
        %v788 = vadd.f32 %v656, %v787
        %789 = vmatprep.mubr.f32.mxu0 0.0
        %790 = vmatmul.mubr.f32.gmra.mxu0 %v672
        %v791 = vpop.f32.mrf.mxu0
        %v792 = vadd.f32 %v652, %v791
        %v793 = vpop.f32.mrf.mxu0
        %v794 = vadd.f32 %v656, %v793
        %795 = vmatprep.mubr.f32.mxu0 0.0
        %796 = vmatmul.mubr.f32.gmra.mxu0 %v675
        %v797 = vpop.f32.mrf.mxu0
        %v798 = vadd.f32 %v652, %v797
        %v799 = vpop.f32.mrf.mxu0
        %v800 = vadd.f32 %v656, %v799
        %801 = vmatprep.mubr.f32.mxu0 0.0
        %802 = vmatmul.mubr.f32.gmra.mxu0 %v678
        %v803 = vpop.f32.mrf.mxu0
        %v804 = vadd.f32 %v652, %v803
        %v805 = vpop.f32.mrf.mxu0
        %v806 = vadd.f32 %v656, %v805
        %807 = vmatprep.mubr.f32.mxu0 0.0
        %808 = vmatmul.mubr.f32.gmra.mxu0 %v681
        %v809 = vpop.f32.mrf.mxu0
        %v810 = vadd.f32 %v652, %v809
        %v811 = vpop.f32.mrf.mxu0
        %v812 = vadd.f32 %v656, %v811
        %813 = vmatprep.mubr.f32.mxu0 0.0
        %814 = vmatmul.mubr.f32.gmra.mxu0 %v684
        %v815 = vpop.f32.mrf.mxu0
        %v816 = vadd.f32 %v652, %v815
        %v817 = vpop.f32.mrf.mxu0
        %v818 = vadd.f32 %v656, %v817
        %819 = vmatprep.mubr.f32.mxu0 0.0
        %820 = vmatmul.mubr.f32.gmra.mxu0 %v687
        %v821 = vpop.f32.mrf.mxu0
        %v822 = vadd.f32 %v652, %v821
        %v823 = vpop.f32.mrf.mxu0
        %v824 = vadd.f32 %v656, %v823
        %825 = vmatprep.mubr.f32.mxu0 0.0
        %826 = vmatmul.mubr.f32.gmra.mxu0 %v690
        %v827 = vpop.f32.mrf.mxu0
        %v828 = vadd.f32 %v652, %v827
        %v829 = vpop.f32.mrf.mxu0
        %v830 = vadd.f32 %v656, %v829
        %831 = vmatprep.mubr.f32.mxu0 0.0
        %832 = vmatmul.mubr.f32.gmra.mxu0 %v693
        %v833 = vpop.f32.mrf.mxu0
        %v834 = vadd.f32 %v652, %v833
        %v835 = vpop.f32.mrf.mxu0
        %v836 = vadd.f32 %v656, %v835
        %837 = vmatprep.mubr.f32.mxu0 0.0
        %838 = vmatmul.mubr.f32.gmra.mxu0 %v696
        %v839 = vpop.f32.mrf.mxu0
        %v840 = vadd.f32 %v652, %v839
        %v841 = vpop.f32.mrf.mxu0
        %v842 = vadd.f32 %v656, %v841
        %843 = vmatprep.mubr.f32.mxu0 0.0
        %844 = vmatmul.mubr.f32.gmra.mxu0 %v699
        %v845 = vpop.f32.mrf.mxu0
        %v846 = vadd.f32 %v652, %v845
        %v847 = vpop.f32.mrf.mxu0
        %v848 = vadd.f32 %v656, %v847
        %849 = vmatprep.mubr.f32.mxu0 0.0
        %850 = vmatmul.mubr.f32.gmra.mxu0 %v702
        %v851 = vpop.f32.mrf.mxu0
        %v852 = vadd.f32 %v652, %v851
        %v853 = vpop.f32.mrf.mxu0
        %v854 = vadd.f32 %v656, %v853
        %855 = vmatprep.mubr.f32.mxu0 0.0
        %856 = vmatmul.mubr.f32.gmra.mxu0 %v705
        %v857 = vpop.f32.mrf.mxu0
        %v858 = vadd.f32 %v652, %v857
        %v859 = vpop.f32.mrf.mxu0
        %v860 = vadd.f32 %v656, %v859
        %861 = vmatprep.mubr.f32.mxu0 0.0
        %862 = vmatmul.mubr.f32.gmra.mxu0 %v708
        %v863 = vpop.f32.mrf.mxu0
        %v864 = vadd.f32 %v652, %v863
        %v865 = vpop.f32.mrf.mxu0
        %v866 = vadd.f32 %v656, %v865
        %867 = vmatprep.mubr.f32.mxu0 0.0
        %868 = vmatmul.mubr.f32.gmra.mxu0 %v711
        %v869 = vpop.f32.mrf.mxu0
        %v870 = vadd.f32 %v652, %v869
        %v871 = vpop.f32.mrf.mxu0
        %v872 = vadd.f32 %v656, %v871
        %873 = vdwg.mxu0
        %874 = vmatprep.subr.mxu0 0.0
        %875 = vmatpush1.msra.mxu0 0.0
        %876 = vmatprep.subr.mxu0 0.0
        %877 = vmatpush1.msra.mxu0 0.0
        %878 = vmatprep.subr.mxu0 0.0
        %879 = vmatpush1.msra.mxu0 0.0
        %880 = vmatprep.subr.mxu0 0.0
        %881 = vmatpush1.msra.mxu0 0.0
        %882 = vmatprep.subr.mxu0 0.0
        %883 = vmatpush1.msra.mxu0 0.0
        %884 = vmatprep.subr.mxu0 0.0
        %885 = vmatpush1.msra.mxu0 0.0
        %886 = vmatprep.subr.mxu0 0.0
        %887 = vmatpush1.msra.mxu0 0.0
        %888 = vmatprep.subr.mxu0 0.0
        %889 = vmatpush1.msra.mxu0 0.0
        %890 = vmatprep.subr.mxu0 0.0
        %891 = vmatpush1.msra.mxu0 0.0
        %892 = vmatprep.subr.mxu0 0.0
        %893 = vmatpush1.msra.mxu0 0.0
        %894 = vmatprep.subr.mxu0 0.0
        %895 = vmatpush1.msra.mxu0 0.0
        %896 = vmatprep.subr.mxu0 0.0
        %897 = vmatpush1.msra.mxu0 0.0
        %898 = vmatprep.subr.mxu0 0.0
        %899 = vmatpush1.msra.mxu0 0.0
        %900 = vmatprep.subr.mxu0 0.0
        %901 = vmatpush1.msra.mxu0 0.0
        %902 = vmatprep.subr.mxu0 0.0
        %903 = vmatpush1.msra.mxu0 %v646
        %904 = vmatprep.subr.mxu0 0.0
        %905 = vmatpush1.msra.mxu0 %v643
        %906 = vmatprep.subr.mxu0 0.0
        %907 = vmatpush2.msra.mxu0 0.0
        %908 = vmatprep.subr.mxu0 0.0
        %909 = vmatpush2.msra.mxu0 0.0
        %910 = vmatprep.subr.mxu0 0.0
        %911 = vmatpush2.msra.mxu0 0.0
        %912 = vmatprep.subr.mxu0 0.0
        %913 = vmatpush2.msra.mxu0 0.0
        %914 = vmatprep.subr.mxu0 0.0
        %915 = vmatpush2.msra.mxu0 0.0
        %916 = vmatprep.subr.mxu0 0.0
        %917 = vmatpush2.msra.mxu0 0.0
        %918 = vmatprep.subr.mxu0 0.0
        %919 = vmatpush2.msra.mxu0 0.0
        %920 = vmatprep.subr.mxu0 0.0
        %921 = vmatpush2.msra.mxu0 0.0
        %922 = vmatprep.subr.mxu0 0.0
        %923 = vmatpush2.msra.mxu0 0.0
        %924 = vmatprep.subr.mxu0 0.0
        %925 = vmatpush2.msra.mxu0 0.0
        %926 = vmatprep.subr.mxu0 0.0
        %927 = vmatpush2.msra.mxu0 0.0
        %928 = vmatprep.subr.mxu0 0.0
        %929 = vmatpush2.msra.mxu0 0.0
        %930 = vmatprep.subr.mxu0 0.0
        %931 = vmatpush2.msra.mxu0 0.0
        %932 = vmatprep.subr.mxu0 0.0
        %933 = vmatpush2.msra.mxu0 0.0
        %934 = vmatprep.subr.mxu0 0.0
        %935 = vmatpush2.msra.mxu0 0.0
        %936 = vmatprep.subr.mxu0 0.0
        %937 = vmatpush2.msra.mxu0 0.0
        %938 = vmatprep.mubr.f32.mxu0 0.0
        %939 = vmatmul.mubr.f32.gmra.mxu0 %v666
        %v940 = vpop.f32.mrf.mxu0
        %v941 = vadd.f32 %v660, %v940
        %v942 = vpop.f32.mrf.mxu0
        %943 = vmatprep.mubr.f32.mxu0 0.0
        %944 = vmatmul.mubr.f32.gmra.mxu0 %v669
        %v945 = vpop.f32.mrf.mxu0
        %v946 = vadd.f32 %v660, %v945
        %v947 = vpop.f32.mrf.mxu0
        %948 = vmatprep.mubr.f32.mxu0 0.0
        %949 = vmatmul.mubr.f32.gmra.mxu0 %v672
        %v950 = vpop.f32.mrf.mxu0
        %v951 = vadd.f32 %v660, %v950
        %v952 = vpop.f32.mrf.mxu0
        %953 = vmatprep.mubr.f32.mxu0 0.0
        %954 = vmatmul.mubr.f32.gmra.mxu0 %v675
        %v955 = vpop.f32.mrf.mxu0
        %v956 = vadd.f32 %v660, %v955
        %v957 = vpop.f32.mrf.mxu0
        %958 = vmatprep.mubr.f32.mxu0 0.0
        %959 = vmatmul.mubr.f32.gmra.mxu0 %v678
        %v960 = vpop.f32.mrf.mxu0
        %v961 = vadd.f32 %v660, %v960
        %v962 = vpop.f32.mrf.mxu0
        %963 = vmatprep.mubr.f32.mxu0 0.0
        %964 = vmatmul.mubr.f32.gmra.mxu0 %v681
        %v965 = vpop.f32.mrf.mxu0
        %v966 = vadd.f32 %v660, %v965
        %v967 = vpop.f32.mrf.mxu0
        %968 = vmatprep.mubr.f32.mxu0 0.0
        %969 = vmatmul.mubr.f32.gmra.mxu0 %v684
        %v970 = vpop.f32.mrf.mxu0
        %v971 = vadd.f32 %v660, %v970
        %v972 = vpop.f32.mrf.mxu0
        %973 = vmatprep.mubr.f32.mxu0 0.0
        %974 = vmatmul.mubr.f32.gmra.mxu0 %v687
        %v975 = vpop.f32.mrf.mxu0
        %v976 = vadd.f32 %v660, %v975
        %v977 = vpop.f32.mrf.mxu0
        %978 = vmatprep.mubr.f32.mxu0 0.0
        %979 = vmatmul.mubr.f32.gmra.mxu0 %v690
        %v980 = vpop.f32.mrf.mxu0
        %v981 = vadd.f32 %v660, %v980
        %v982 = vpop.f32.mrf.mxu0
        %983 = vmatprep.mubr.f32.mxu0 0.0
        %984 = vmatmul.mubr.f32.gmra.mxu0 %v693
        %v985 = vpop.f32.mrf.mxu0
        %v986 = vadd.f32 %v660, %v985
        %v987 = vpop.f32.mrf.mxu0
        %988 = vmatprep.mubr.f32.mxu0 0.0
        %989 = vmatmul.mubr.f32.gmra.mxu0 %v696
        %v990 = vpop.f32.mrf.mxu0
        %v991 = vadd.f32 %v660, %v990
        %v992 = vpop.f32.mrf.mxu0
        %993 = vmatprep.mubr.f32.mxu0 0.0
        %994 = vmatmul.mubr.f32.gmra.mxu0 %v699
        %v995 = vpop.f32.mrf.mxu0
        %v996 = vadd.f32 %v660, %v995
        %v997 = vpop.f32.mrf.mxu0
        %998 = vmatprep.mubr.f32.mxu0 0.0
        %999 = vmatmul.mubr.f32.gmra.mxu0 %v702
        %v1000 = vpop.f32.mrf.mxu0
        %v1001 = vadd.f32 %v660, %v1000
        %v1002 = vpop.f32.mrf.mxu0
        %1003 = vmatprep.mubr.f32.mxu0 0.0
        %1004 = vmatmul.mubr.f32.gmra.mxu0 %v705
        %v1005 = vpop.f32.mrf.mxu0
        %v1006 = vadd.f32 %v660, %v1005
        %v1007 = vpop.f32.mrf.mxu0
        %1008 = vmatprep.mubr.f32.mxu0 0.0
        %1009 = vmatmul.mubr.f32.gmra.mxu0 %v708
        %v1010 = vpop.f32.mrf.mxu0
        %v1011 = vadd.f32 %v660, %v1010
        %v1012 = vpop.f32.mrf.mxu0
        %1013 = vmatprep.mubr.f32.mxu0 0.0
        %1014 = vmatmul.mubr.f32.gmra.mxu0 %v711
        %v1015 = vpop.f32.mrf.mxu0
        %v1016 = vadd.f32 %v660, %v1015
        %v1017 = vpop.f32.mrf.mxu0
        %1018 = vdwg.mxu0
        %v1019 = vxor.u32 %v780, 2147483648
        %v1020 = vxor.u32 %v786, 2147483648
        %v1021 = vxor.u32 %v792, 2147483648
        %v1022 = vxor.u32 %v798, 2147483648
        %v1023 = vxor.u32 %v804, 2147483648
        %v1024 = vxor.u32 %v810, 2147483648
        %v1025 = vxor.u32 %v816, 2147483648
        %v1026 = vxor.u32 %v822, 2147483648
        %v1027 = vxor.u32 %v828, 2147483648
        %v1028 = vxor.u32 %v834, 2147483648
        %v1029 = vxor.u32 %v840, 2147483648
        %v1030 = vxor.u32 %v846, 2147483648
        %v1031 = vxor.u32 %v852, 2147483648
        %v1032 = vxor.u32 %v858, 2147483648
        %v1033 = vxor.u32 %v864, 2147483648
        %v1034 = vxor.u32 %v870, 2147483648
        %v1035 = vmul.f32 %v1019, 1.442695
        %v1036 = vpow.pop %v1035
        %v1037 = vmul.f32 %v1020, 1.442695
        %v1038 = vpow.pop %v1037
        %v1039 = vmul.f32 %v1021, 1.442695
        %v1040 = vpow.pop %v1039
        %v1041 = vmul.f32 %v1022, 1.442695
        %v1042 = vpow.pop %v1041
        %v1043 = vmul.f32 %v1023, 1.442695
        %v1044 = vpow.pop %v1043
        %v1045 = vmul.f32 %v1024, 1.442695
        %v1046 = vpow.pop %v1045
        %v1047 = vmul.f32 %v1025, 1.442695
        %v1048 = vpow.pop %v1047
        %v1049 = vmul.f32 %v1026, 1.442695
        %v1050 = vpow.pop %v1049
        %v1051 = vmul.f32 %v1027, 1.442695
        %v1052 = vpow.pop %v1051
        %v1053 = vmul.f32 %v1028, 1.442695
        %v1054 = vpow.pop %v1053
        %v1055 = vmul.f32 %v1029, 1.442695
        %v1056 = vpow.pop %v1055
        %v1057 = vmul.f32 %v1030, 1.442695
        %v1058 = vpow.pop %v1057
        %v1059 = vmul.f32 %v1031, 1.442695
        %v1060 = vpow.pop %v1059
        %v1061 = vmul.f32 %v1032, 1.442695
        %v1062 = vpow.pop %v1061
        %v1063 = vmul.f32 %v1033, 1.442695
        %v1064 = vpow.pop %v1063
        %v1065 = vmul.f32 %v1034, 1.442695
        %v1066 = vpow.pop %v1065
        %v1067 = vadd.f32 %v1036, 1.0
        %v1068 = vadd.f32 %v1038, 1.0
        %v1069 = vadd.f32 %v1040, 1.0
        %v1070 = vadd.f32 %v1042, 1.0
        %v1071 = vadd.f32 %v1044, 1.0
        %v1072 = vadd.f32 %v1046, 1.0
        %v1073 = vadd.f32 %v1048, 1.0
        %v1074 = vadd.f32 %v1050, 1.0
        %v1075 = vadd.f32 %v1052, 1.0
        %v1076 = vadd.f32 %v1054, 1.0
        %v1077 = vadd.f32 %v1056, 1.0
        %v1078 = vadd.f32 %v1058, 1.0
        %v1079 = vadd.f32 %v1060, 1.0
        %v1080 = vadd.f32 %v1062, 1.0
        %v1081 = vadd.f32 %v1064, 1.0
        %v1082 = vadd.f32 %v1066, 1.0
        %v1083 = vrcp.pop %v1067
        %v1084 = vmul.f32 1.0, %v1083
        %v1085 = vrcp.pop %v1068
        %v1086 = vmul.f32 1.0, %v1085
        %v1087 = vrcp.pop %v1069
        %v1088 = vmul.f32 1.0, %v1087
        %v1089 = vrcp.pop %v1070
        %v1090 = vmul.f32 1.0, %v1089
        %v1091 = vrcp.pop %v1071
        %v1092 = vmul.f32 1.0, %v1091
        %v1093 = vrcp.pop %v1072
        %v1094 = vmul.f32 1.0, %v1093
        %v1095 = vrcp.pop %v1073
        %v1096 = vmul.f32 1.0, %v1095
        %v1097 = vrcp.pop %v1074
        %v1098 = vmul.f32 1.0, %v1097
        %v1099 = vrcp.pop %v1075
        %v1100 = vmul.f32 1.0, %v1099
        %v1101 = vrcp.pop %v1076
        %v1102 = vmul.f32 1.0, %v1101
        %v1103 = vrcp.pop %v1077
        %v1104 = vmul.f32 1.0, %v1103
        %v1105 = vrcp.pop %v1078
        %v1106 = vmul.f32 1.0, %v1105
        %v1107 = vrcp.pop %v1079
        %v1108 = vmul.f32 1.0, %v1107
        %v1109 = vrcp.pop %v1080
        %v1110 = vmul.f32 1.0, %v1109
        %v1111 = vrcp.pop %v1081
        %v1112 = vmul.f32 1.0, %v1111
        %v1113 = vrcp.pop %v1082
        %v1114 = vmul.f32 1.0, %v1113
        %v1115 = vxor.u32 %v782, 2147483648
        %v1116 = vxor.u32 %v788, 2147483648
        %v1117 = vxor.u32 %v794, 2147483648
        %v1118 = vxor.u32 %v800, 2147483648
        %v1119 = vxor.u32 %v806, 2147483648
        %v1120 = vxor.u32 %v812, 2147483648
        %v1121 = vxor.u32 %v818, 2147483648
        %v1122 = vxor.u32 %v824, 2147483648
        %v1123 = vxor.u32 %v830, 2147483648
        %v1124 = vxor.u32 %v836, 2147483648
        %v1125 = vxor.u32 %v842, 2147483648
        %v1126 = vxor.u32 %v848, 2147483648
        %v1127 = vxor.u32 %v854, 2147483648
        %v1128 = vxor.u32 %v860, 2147483648
        %v1129 = vxor.u32 %v866, 2147483648
        %v1130 = vxor.u32 %v872, 2147483648
        %v1131 = vmul.f32 %v1115, 1.442695
        %v1132 = vpow.pop %v1131
        %v1133 = vmul.f32 %v1116, 1.442695
        %v1134 = vpow.pop %v1133
        %v1135 = vmul.f32 %v1117, 1.442695
        %v1136 = vpow.pop %v1135
        %v1137 = vmul.f32 %v1118, 1.442695
        %v1138 = vpow.pop %v1137
        %v1139 = vmul.f32 %v1119, 1.442695
        %v1140 = vpow.pop %v1139
        %v1141 = vmul.f32 %v1120, 1.442695
        %v1142 = vpow.pop %v1141
        %v1143 = vmul.f32 %v1121, 1.442695
        %v1144 = vpow.pop %v1143
        %v1145 = vmul.f32 %v1122, 1.442695
        %v1146 = vpow.pop %v1145
        %v1147 = vmul.f32 %v1123, 1.442695
        %v1148 = vpow.pop %v1147
        %v1149 = vmul.f32 %v1124, 1.442695
        %v1150 = vpow.pop %v1149
        %v1151 = vmul.f32 %v1125, 1.442695
        %v1152 = vpow.pop %v1151
        %v1153 = vmul.f32 %v1126, 1.442695
        %v1154 = vpow.pop %v1153
        %v1155 = vmul.f32 %v1127, 1.442695
        %v1156 = vpow.pop %v1155
        %v1157 = vmul.f32 %v1128, 1.442695
        %v1158 = vpow.pop %v1157
        %v1159 = vmul.f32 %v1129, 1.442695
        %v1160 = vpow.pop %v1159
        %v1161 = vmul.f32 %v1130, 1.442695
        %v1162 = vpow.pop %v1161
        %v1163 = vadd.f32 %v1132, 1.0
        %v1164 = vadd.f32 %v1134, 1.0
        %v1165 = vadd.f32 %v1136, 1.0
        %v1166 = vadd.f32 %v1138, 1.0
        %v1167 = vadd.f32 %v1140, 1.0
        %v1168 = vadd.f32 %v1142, 1.0
        %v1169 = vadd.f32 %v1144, 1.0
        %v1170 = vadd.f32 %v1146, 1.0
        %v1171 = vadd.f32 %v1148, 1.0
        %v1172 = vadd.f32 %v1150, 1.0
        %v1173 = vadd.f32 %v1152, 1.0
        %v1174 = vadd.f32 %v1154, 1.0
        %v1175 = vadd.f32 %v1156, 1.0
        %v1176 = vadd.f32 %v1158, 1.0
        %v1177 = vadd.f32 %v1160, 1.0
        %v1178 = vadd.f32 %v1162, 1.0
        %v1179 = vrcp.pop %v1163
        %v1180 = vmul.f32 1.0, %v1179
        %v1181 = vrcp.pop %v1164
        %v1182 = vmul.f32 1.0, %v1181
        %v1183 = vrcp.pop %v1165
        %v1184 = vmul.f32 1.0, %v1183
        %v1185 = vrcp.pop %v1166
        %v1186 = vmul.f32 1.0, %v1185
        %v1187 = vrcp.pop %v1167
        %v1188 = vmul.f32 1.0, %v1187
        %v1189 = vrcp.pop %v1168
        %v1190 = vmul.f32 1.0, %v1189
        %v1191 = vrcp.pop %v1169
        %v1192 = vmul.f32 1.0, %v1191
        %v1193 = vrcp.pop %v1170
        %v1194 = vmul.f32 1.0, %v1193
        %v1195 = vrcp.pop %v1171
        %v1196 = vmul.f32 1.0, %v1195
        %v1197 = vrcp.pop %v1172
        %v1198 = vmul.f32 1.0, %v1197
        %v1199 = vrcp.pop %v1173
        %v1200 = vmul.f32 1.0, %v1199
        %v1201 = vrcp.pop %v1174
        %v1202 = vmul.f32 1.0, %v1201
        %v1203 = vrcp.pop %v1175
        %v1204 = vmul.f32 1.0, %v1203
        %v1205 = vrcp.pop %v1176
        %v1206 = vmul.f32 1.0, %v1205
        %v1207 = vrcp.pop %v1177
        %v1208 = vmul.f32 1.0, %v1207
        %v1209 = vrcp.pop %v1178
        %v1210 = vmul.f32 1.0, %v1209
        %v1211 = vld [vmem:[%s4] sm:$0x1]
        %v1213 = vlaneseq
        %v1214 = vshrl.u32 %v1213, 7
        %v1215 = vsub.s32 0, %v1214
        %v1216 = vrot.slane %v1211, %v1215
        %v1218 = vmul.f32 %v1084, %v1216
        %v1219 = vmul.f32 %v1086, %v1216
        %v1220 = vmul.f32 %v1088, %v1216
        %v1221 = vmul.f32 %v1090, %v1216
        %v1222 = vmul.f32 %v1092, %v1216
        %v1223 = vmul.f32 %v1094, %v1216
        %v1224 = vmul.f32 %v1096, %v1216
        %v1225 = vmul.f32 %v1098, %v1216
        %v1226 = vmul.f32 %v1100, %v1216
        %v1227 = vmul.f32 %v1102, %v1216
        %v1228 = vmul.f32 %v1104, %v1216
        %v1229 = vmul.f32 %v1106, %v1216
        %v1230 = vmul.f32 %v1108, %v1216
        %v1231 = vmul.f32 %v1110, %v1216
        %v1232 = vmul.f32 %v1112, %v1216
        %v1233 = vmul.f32 %v1114, %v1216
        %v1234 = vadd.f32 %v941, %v1218
        %v1235 = vadd.f32 %v946, %v1219
        %v1236 = vadd.f32 %v951, %v1220
        %v1237 = vadd.f32 %v956, %v1221
        %v1238 = vadd.f32 %v961, %v1222
        %v1239 = vadd.f32 %v966, %v1223
        %v1240 = vadd.f32 %v971, %v1224
        %v1241 = vadd.f32 %v976, %v1225
        %v1242 = vadd.f32 %v981, %v1226
        %v1243 = vadd.f32 %v986, %v1227
        %v1244 = vadd.f32 %v991, %v1228
        %v1245 = vadd.f32 %v996, %v1229
        %v1246 = vadd.f32 %v1001, %v1230
        %v1247 = vadd.f32 %v1006, %v1231
        %v1248 = vadd.f32 %v1011, %v1232
        %v1249 = vadd.f32 %v1016, %v1233
        %v1250 = vtanh.pop %v1234
        %v1251 = vtanh.pop %v1235
        %v1252 = vtanh.pop %v1236
        %v1253 = vtanh.pop %v1237
        %v1254 = vtanh.pop %v1238
        %v1255 = vtanh.pop %v1239
        %v1256 = vtanh.pop %v1240
        %v1257 = vtanh.pop %v1241
        %v1258 = vtanh.pop %v1242
        %v1259 = vtanh.pop %v1243
        %v1260 = vtanh.pop %v1244
        %v1261 = vtanh.pop %v1245
        %v1262 = vtanh.pop %v1246
        %v1263 = vtanh.pop %v1247
        %v1264 = vtanh.pop %v1248
        %v1265 = vtanh.pop %v1249
        %v1266 = vsub.f32 1.0, %v1180
        %v1267 = vsub.f32 1.0, %v1182
        %v1268 = vsub.f32 1.0, %v1184
        %v1269 = vsub.f32 1.0, %v1186
        %v1270 = vsub.f32 1.0, %v1188
        %v1271 = vsub.f32 1.0, %v1190
        %v1272 = vsub.f32 1.0, %v1192
        %v1273 = vsub.f32 1.0, %v1194
        %v1274 = vsub.f32 1.0, %v1196
        %v1275 = vsub.f32 1.0, %v1198
        %v1276 = vsub.f32 1.0, %v1200
        %v1277 = vsub.f32 1.0, %v1202
        %v1278 = vsub.f32 1.0, %v1204
        %v1279 = vsub.f32 1.0, %v1206
        %v1280 = vsub.f32 1.0, %v1208
        %v1281 = vsub.f32 1.0, %v1210
        %v1282 = vmul.f32 %v1266, %v1250
        %v1283 = vmul.f32 %v1267, %v1251
        %v1284 = vmul.f32 %v1268, %v1252
        %v1285 = vmul.f32 %v1269, %v1253
        %v1286 = vmul.f32 %v1270, %v1254
        %v1287 = vmul.f32 %v1271, %v1255
        %v1288 = vmul.f32 %v1272, %v1256
        %v1289 = vmul.f32 %v1273, %v1257
        %v1290 = vmul.f32 %v1274, %v1258
        %v1291 = vmul.f32 %v1275, %v1259
        %v1292 = vmul.f32 %v1276, %v1260
        %v1293 = vmul.f32 %v1277, %v1261
        %v1294 = vmul.f32 %v1278, %v1262
        %v1295 = vmul.f32 %v1279, %v1263
        %v1296 = vmul.f32 %v1280, %v1264
        %v1297 = vmul.f32 %v1281, %v1265
        %1298 = vst [vmem:[%s314] sm:$0xff] %v1282
        %1299 = vst [vmem:[%s314 + $0x10] sm:$0xff] %v1283
        %1300 = vst [vmem:[%s314 + $0x20] sm:$0xff] %v1284
        %1301 = vst [vmem:[%s314 + $0x30] sm:$0xff] %v1285
        %1302 = vst [vmem:[%s314 + $0x40] sm:$0xff] %v1286
        %1303 = vst [vmem:[%s314 + $0x50] sm:$0xff] %v1287
        %1304 = vst [vmem:[%s314 + $0x60] sm:$0xff] %v1288
        %1305 = vst [vmem:[%s314 + $0x70] sm:$0xff] %v1289
        %1306 = vst [vmem:[%s314 + $0x80] sm:$0xff] %v1290
        %1307 = vst [vmem:[%s314 + $0x90] sm:$0xff] %v1291
        %1308 = vst [vmem:[%s314 + $0xa0] sm:$0xff] %v1292
        %1309 = vst [vmem:[%s314 + $0xb0] sm:$0xff] %v1293
        %1310 = vst [vmem:[%s314 + $0xc0] sm:$0xff] %v1294
        %1311 = vst [vmem:[%s314 + $0xd0] sm:$0xff] %v1295
        %1312 = vst [vmem:[%s314 + $0xe0] sm:$0xff] %v1296
        %1313 = vst [vmem:[%s314 + $0xf0] sm:$0xff] %v1297
        %v1314 = vld [vmem:[#allocation2] sm:$0xff]
        %v1315 = vld [vmem:[#allocation2 + $0x8] sm:$0xff]
        %v1316 = vld [vmem:[#allocation2 + $0x10] sm:$0xff]
        %v1317 = vld [vmem:[#allocation2 + $0x18] sm:$0xff]
        %v1318 = vld [vmem:[#allocation2 + $0x20] sm:$0xff]
        %v1319 = vld [vmem:[#allocation2 + $0x28] sm:$0xff]
        %v1320 = vld [vmem:[#allocation2 + $0x30] sm:$0xff]
        %v1321 = vld [vmem:[#allocation2 + $0x38] sm:$0xff]
        %v1322 = vld [vmem:[#allocation2 + $0x40] sm:$0xff]
        %v1323 = vld [vmem:[#allocation2 + $0x48] sm:$0xff]
        %v1324 = vld [vmem:[#allocation2 + $0x50] sm:$0xff]
        %v1325 = vld [vmem:[#allocation2 + $0x58] sm:$0xff]
        %v1326 = vld [vmem:[#allocation2 + $0x60] sm:$0xff]
        %v1327 = vld [vmem:[#allocation2 + $0x68] sm:$0xff]
        %v1328 = vld [vmem:[#allocation2 + $0x70] sm:$0xff]
        %v1329 = vld [vmem:[#allocation2 + $0x78] sm:$0xff]
        %v1330 = vld [vmem:[#allocation2 + $0x80] sm:$0xff]
        %v1331 = vld [vmem:[#allocation2 + $0x88] sm:$0xff]
        %v1332 = vld [vmem:[#allocation2 + $0x90] sm:$0xff]
        %v1333 = vld [vmem:[#allocation2 + $0x98] sm:$0xff]
        %v1334 = vld [vmem:[#allocation2 + $0xa0] sm:$0xff]
        %v1335 = vld [vmem:[#allocation2 + $0xa8] sm:$0xff]
        %v1336 = vld [vmem:[#allocation2 + $0xb0] sm:$0xff]
        %v1337 = vld [vmem:[#allocation2 + $0xb8] sm:$0xff]
        %v1338 = vld [vmem:[#allocation2 + $0xc0] sm:$0xff]
        %v1339 = vld [vmem:[#allocation2 + $0xc8] sm:$0xff]
        %v1340 = vld [vmem:[#allocation2 + $0xd0] sm:$0xff]
        %v1341 = vld [vmem:[#allocation2 + $0xd8] sm:$0xff]
        %v1342 = vld [vmem:[#allocation2 + $0xe0] sm:$0xff]
        %v1343 = vld [vmem:[#allocation2 + $0xe8] sm:$0xff]
        %v1344 = vld [vmem:[#allocation2 + $0xf0] sm:$0xff]
        %v1345 = vld [vmem:[#allocation2 + $0xf8] sm:$0xff]
        %v1346 = vld [vmem:[#allocation2 + $0x100] sm:$0xff]
        %v1347 = vld [vmem:[#allocation2 + $0x108] sm:$0xff]
        %v1348 = vld [vmem:[#allocation2 + $0x110] sm:$0xff]
        %v1349 = vld [vmem:[#allocation2 + $0x118] sm:$0xff]
        %v1350 = vld [vmem:[#allocation2 + $0x120] sm:$0xff]
        %v1351 = vld [vmem:[#allocation2 + $0x128] sm:$0xff]
        %v1352 = vld [vmem:[#allocation2 + $0x130] sm:$0xff]
        %v1353 = vld [vmem:[#allocation2 + $0x138] sm:$0xff]
        %v1354 = vld [vmem:[#allocation2 + $0x140] sm:$0xff]
        %v1355 = vld [vmem:[#allocation2 + $0x148] sm:$0xff]
        %v1356 = vld [vmem:[#allocation2 + $0x150] sm:$0xff]
        %v1357 = vld [vmem:[#allocation2 + $0x158] sm:$0xff]
        %v1358 = vld [vmem:[#allocation2 + $0x160] sm:$0xff]
        %v1359 = vld [vmem:[#allocation2 + $0x168] sm:$0xff]
        %v1360 = vld [vmem:[#allocation2 + $0x170] sm:$0xff]
        %v1361 = vld [vmem:[#allocation2 + $0x178] sm:$0xff]
        %v1362 = vld [vmem:[%s6] sm:$0x7]
        %v1364 = vlaneseq
        %v1365 = vshrl.u32 %v1364, 7
        %v1366 = vsub.s32 0, %v1365
        %v1367 = vrot.slane %v1362, %v1366
        %v1368 = vlaneseq
        %v1369 = vshrl.u32 %v1368, 7
        %v1370 = vsub.s32 1, %v1369
        %v1371 = vrot.slane %v1362, %v1370
        %v1372 = vlaneseq
        %v1373 = vshrl.u32 %v1372, 7
        %v1374 = vsub.s32 2, %v1373
        %v1375 = vrot.slane %v1362, %v1374
        %1379 = vmatprep.subr.mxu0 %v1360
        %1380 = vmatpush1.msra.mxu0 %v1359
        %1381 = vmatprep.subr.mxu0 %v1357
        %1382 = vmatpush1.msra.mxu0 %v1356
        %1383 = vmatprep.subr.mxu0 %v1354
        %1384 = vmatpush1.msra.mxu0 %v1353
        %1385 = vmatprep.subr.mxu0 %v1351
        %1386 = vmatpush1.msra.mxu0 %v1350
        %1387 = vmatprep.subr.mxu0 %v1348
        %1388 = vmatpush1.msra.mxu0 %v1347
        %1389 = vmatprep.subr.mxu0 %v1345
        %1390 = vmatpush1.msra.mxu0 %v1344
        %1391 = vmatprep.subr.mxu0 %v1342
        %1392 = vmatpush1.msra.mxu0 %v1341
        %1393 = vmatprep.subr.mxu0 %v1339
        %1394 = vmatpush1.msra.mxu0 %v1338
        %1395 = vmatprep.subr.mxu0 %v1336
        %1396 = vmatpush1.msra.mxu0 %v1335
        %1397 = vmatprep.subr.mxu0 %v1333
        %1398 = vmatpush1.msra.mxu0 %v1332
        %1399 = vmatprep.subr.mxu0 %v1330
        %1400 = vmatpush1.msra.mxu0 %v1329
        %1401 = vmatprep.subr.mxu0 %v1327
        %1402 = vmatpush1.msra.mxu0 %v1326
        %1403 = vmatprep.subr.mxu0 %v1324
        %1404 = vmatpush1.msra.mxu0 %v1323
        %1405 = vmatprep.subr.mxu0 %v1321
        %1406 = vmatpush1.msra.mxu0 %v1320
        %1407 = vmatprep.subr.mxu0 %v1318
        %1408 = vmatpush1.msra.mxu0 %v1317
        %1409 = vmatprep.subr.mxu0 %v1315
        %1410 = vmatpush1.msra.mxu0 %v1314
        %1411 = vmatprep.subr.mxu0 0.0
        %1412 = vmatpush2.msra.mxu0 0.0
        %1413 = vmatprep.subr.mxu0 0.0
        %1414 = vmatpush2.msra.mxu0 0.0
        %1415 = vmatprep.subr.mxu0 0.0
        %1416 = vmatpush2.msra.mxu0 0.0
        %1417 = vmatprep.subr.mxu0 0.0
        %1418 = vmatpush2.msra.mxu0 0.0
        %1419 = vmatprep.subr.mxu0 0.0
        %1420 = vmatpush2.msra.mxu0 0.0
        %1421 = vmatprep.subr.mxu0 0.0
        %1422 = vmatpush2.msra.mxu0 0.0
        %1423 = vmatprep.subr.mxu0 0.0
        %1424 = vmatpush2.msra.mxu0 0.0
        %1425 = vmatprep.subr.mxu0 0.0
        %1426 = vmatpush2.msra.mxu0 0.0
        %1427 = vmatprep.subr.mxu0 0.0
        %1428 = vmatpush2.msra.mxu0 0.0
        %1429 = vmatprep.subr.mxu0 0.0
        %1430 = vmatpush2.msra.mxu0 0.0
        %1431 = vmatprep.subr.mxu0 0.0
        %1432 = vmatpush2.msra.mxu0 0.0
        %1433 = vmatprep.subr.mxu0 0.0
        %1434 = vmatpush2.msra.mxu0 0.0
        %1435 = vmatprep.subr.mxu0 0.0
        %1436 = vmatpush2.msra.mxu0 0.0
        %1437 = vmatprep.subr.mxu0 0.0
        %1438 = vmatpush2.msra.mxu0 0.0
        %1439 = vmatprep.subr.mxu0 0.0
        %1440 = vmatpush2.msra.mxu0 0.0
        %1441 = vmatprep.subr.mxu0 0.0
        %1442 = vmatpush2.msra.mxu0 0.0
        %1443 = vmatprep.mubr.f32.mxu0 0.0
        %1444 = vmatmul.mubr.f32.gmra.mxu0 %v1282
        %v1445 = vpop.f32.mrf.mxu0
        %v1446 = vadd.f32 %v1367, %v1445
        %v1447 = vpop.f32.mrf.mxu0
        %v1448 = vadd.f32 %v1371, %v1447
        %1449 = vmatprep.mubr.f32.mxu0 0.0
        %1450 = vmatmul.mubr.f32.gmra.mxu0 %v1283
        %v1451 = vpop.f32.mrf.mxu0
        %v1452 = vadd.f32 %v1367, %v1451
        %v1453 = vpop.f32.mrf.mxu0
        %v1454 = vadd.f32 %v1371, %v1453
        %1455 = vmatprep.mubr.f32.mxu0 0.0
        %1456 = vmatmul.mubr.f32.gmra.mxu0 %v1284
        %v1457 = vpop.f32.mrf.mxu0
        %v1458 = vadd.f32 %v1367, %v1457
        %v1459 = vpop.f32.mrf.mxu0
        %v1460 = vadd.f32 %v1371, %v1459
        %1461 = vmatprep.mubr.f32.mxu0 0.0
        %1462 = vmatmul.mubr.f32.gmra.mxu0 %v1285
        %v1463 = vpop.f32.mrf.mxu0
        %v1464 = vadd.f32 %v1367, %v1463
        %v1465 = vpop.f32.mrf.mxu0
        %v1466 = vadd.f32 %v1371, %v1465
        %1467 = vmatprep.mubr.f32.mxu0 0.0
        %1468 = vmatmul.mubr.f32.gmra.mxu0 %v1286
        %v1469 = vpop.f32.mrf.mxu0
        %v1470 = vadd.f32 %v1367, %v1469
        %v1471 = vpop.f32.mrf.mxu0
        %v1472 = vadd.f32 %v1371, %v1471
        %1473 = vmatprep.mubr.f32.mxu0 0.0
        %1474 = vmatmul.mubr.f32.gmra.mxu0 %v1287
        %v1475 = vpop.f32.mrf.mxu0
        %v1476 = vadd.f32 %v1367, %v1475
        %v1477 = vpop.f32.mrf.mxu0
        %v1478 = vadd.f32 %v1371, %v1477
        %1479 = vmatprep.mubr.f32.mxu0 0.0
        %1480 = vmatmul.mubr.f32.gmra.mxu0 %v1288
        %v1481 = vpop.f32.mrf.mxu0
        %v1482 = vadd.f32 %v1367, %v1481
        %v1483 = vpop.f32.mrf.mxu0
        %v1484 = vadd.f32 %v1371, %v1483
        %1485 = vmatprep.mubr.f32.mxu0 0.0
        %1486 = vmatmul.mubr.f32.gmra.mxu0 %v1289
        %v1487 = vpop.f32.mrf.mxu0
        %v1488 = vadd.f32 %v1367, %v1487
        %v1489 = vpop.f32.mrf.mxu0
        %v1490 = vadd.f32 %v1371, %v1489
        %1491 = vmatprep.mubr.f32.mxu0 0.0
        %1492 = vmatmul.mubr.f32.gmra.mxu0 %v1290
        %v1493 = vpop.f32.mrf.mxu0
        %v1494 = vadd.f32 %v1367, %v1493
        %v1495 = vpop.f32.mrf.mxu0
        %v1496 = vadd.f32 %v1371, %v1495
        %1497 = vmatprep.mubr.f32.mxu0 0.0
        %1498 = vmatmul.mubr.f32.gmra.mxu0 %v1291
        %v1499 = vpop.f32.mrf.mxu0
        %v1500 = vadd.f32 %v1367, %v1499
        %v1501 = vpop.f32.mrf.mxu0
        %v1502 = vadd.f32 %v1371, %v1501
        %1503 = vmatprep.mubr.f32.mxu0 0.0
        %1504 = vmatmul.mubr.f32.gmra.mxu0 %v1292
        %v1505 = vpop.f32.mrf.mxu0
        %v1506 = vadd.f32 %v1367, %v1505
        %v1507 = vpop.f32.mrf.mxu0
        %v1508 = vadd.f32 %v1371, %v1507
        %1509 = vmatprep.mubr.f32.mxu0 0.0
        %1510 = vmatmul.mubr.f32.gmra.mxu0 %v1293
        %v1511 = vpop.f32.mrf.mxu0
        %v1512 = vadd.f32 %v1367, %v1511
        %v1513 = vpop.f32.mrf.mxu0
        %v1514 = vadd.f32 %v1371, %v1513
        %1515 = vmatprep.mubr.f32.mxu0 0.0
        %1516 = vmatmul.mubr.f32.gmra.mxu0 %v1294
        %v1517 = vpop.f32.mrf.mxu0
        %v1518 = vadd.f32 %v1367, %v1517
        %v1519 = vpop.f32.mrf.mxu0
        %v1520 = vadd.f32 %v1371, %v1519
        %1521 = vmatprep.mubr.f32.mxu0 0.0
        %1522 = vmatmul.mubr.f32.gmra.mxu0 %v1295
        %v1523 = vpop.f32.mrf.mxu0
        %v1524 = vadd.f32 %v1367, %v1523
        %v1525 = vpop.f32.mrf.mxu0
        %v1526 = vadd.f32 %v1371, %v1525
        %1527 = vmatprep.mubr.f32.mxu0 0.0
        %1528 = vmatmul.mubr.f32.gmra.mxu0 %v1296
        %v1529 = vpop.f32.mrf.mxu0
        %v1530 = vadd.f32 %v1367, %v1529
        %v1531 = vpop.f32.mrf.mxu0
        %v1532 = vadd.f32 %v1371, %v1531
        %1533 = vmatprep.mubr.f32.mxu0 0.0
        %1534 = vmatmul.mubr.f32.gmra.mxu0 %v1297
        %v1535 = vpop.f32.mrf.mxu0
        %v1536 = vadd.f32 %v1367, %v1535
        %v1537 = vpop.f32.mrf.mxu0
        %v1538 = vadd.f32 %v1371, %v1537
        %1539 = vdwg.mxu0
        %1540 = vmatprep.subr.mxu0 0.0
        %1541 = vmatpush1.msra.mxu0 %v1361
        %1542 = vmatprep.subr.mxu0 0.0
        %1543 = vmatpush1.msra.mxu0 %v1358
        %1544 = vmatprep.subr.mxu0 0.0
        %1545 = vmatpush1.msra.mxu0 %v1355
        %1546 = vmatprep.subr.mxu0 0.0
        %1547 = vmatpush1.msra.mxu0 %v1352
        %1548 = vmatprep.subr.mxu0 0.0
        %1549 = vmatpush1.msra.mxu0 %v1349
        %1550 = vmatprep.subr.mxu0 0.0
        %1551 = vmatpush1.msra.mxu0 %v1346
        %1552 = vmatprep.subr.mxu0 0.0
        %1553 = vmatpush1.msra.mxu0 %v1343
        %1554 = vmatprep.subr.mxu0 0.0
        %1555 = vmatpush1.msra.mxu0 %v1340
        %1556 = vmatprep.subr.mxu0 0.0
        %1557 = vmatpush1.msra.mxu0 %v1337
        %1558 = vmatprep.subr.mxu0 0.0
        %1559 = vmatpush1.msra.mxu0 %v1334
        %1560 = vmatprep.subr.mxu0 0.0
        %1561 = vmatpush1.msra.mxu0 %v1331
        %1562 = vmatprep.subr.mxu0 0.0
        %1563 = vmatpush1.msra.mxu0 %v1328
        %1564 = vmatprep.subr.mxu0 0.0
        %1565 = vmatpush1.msra.mxu0 %v1325
        %1566 = vmatprep.subr.mxu0 0.0
        %1567 = vmatpush1.msra.mxu0 %v1322
        %1568 = vmatprep.subr.mxu0 0.0
        %1569 = vmatpush1.msra.mxu0 %v1319
        %1570 = vmatprep.subr.mxu0 0.0
        %1571 = vmatpush1.msra.mxu0 %v1316
        %1572 = vmatprep.subr.mxu0 0.0
        %1573 = vmatpush2.msra.mxu0 0.0
        %1574 = vmatprep.subr.mxu0 0.0
        %1575 = vmatpush2.msra.mxu0 0.0
        %1576 = vmatprep.subr.mxu0 0.0
        %1577 = vmatpush2.msra.mxu0 0.0
        %1578 = vmatprep.subr.mxu0 0.0
        %1579 = vmatpush2.msra.mxu0 0.0
        %1580 = vmatprep.subr.mxu0 0.0
        %1581 = vmatpush2.msra.mxu0 0.0
        %1582 = vmatprep.subr.mxu0 0.0
        %1583 = vmatpush2.msra.mxu0 0.0
        %1584 = vmatprep.subr.mxu0 0.0
        %1585 = vmatpush2.msra.mxu0 0.0
        %1586 = vmatprep.subr.mxu0 0.0
        %1587 = vmatpush2.msra.mxu0 0.0
        %1588 = vmatprep.subr.mxu0 0.0
        %1589 = vmatpush2.msra.mxu0 0.0
        %1590 = vmatprep.subr.mxu0 0.0
        %1591 = vmatpush2.msra.mxu0 0.0
        %1592 = vmatprep.subr.mxu0 0.0
        %1593 = vmatpush2.msra.mxu0 0.0
        %1594 = vmatprep.subr.mxu0 0.0
        %1595 = vmatpush2.msra.mxu0 0.0
        %1596 = vmatprep.subr.mxu0 0.0
        %1597 = vmatpush2.msra.mxu0 0.0
        %1598 = vmatprep.subr.mxu0 0.0
        %1599 = vmatpush2.msra.mxu0 0.0
        %1600 = vmatprep.subr.mxu0 0.0
        %1601 = vmatpush2.msra.mxu0 0.0
        %1602 = vmatprep.subr.mxu0 0.0
        %1603 = vmatpush2.msra.mxu0 0.0
        %1604 = vmatprep.mubr.f32.mxu0 0.0
        %1605 = vmatmul.mubr.f32.gmra.mxu0 %v1282
        %v1606 = vpop.f32.mrf.mxu0
        %v1607 = vadd.f32 %v1375, %v1606
        %v1608 = vpop.f32.mrf.mxu0
        %1609 = vmatprep.mubr.f32.mxu0 0.0
        %1610 = vmatmul.mubr.f32.gmra.mxu0 %v1283
        %v1611 = vpop.f32.mrf.mxu0
        %v1612 = vadd.f32 %v1375, %v1611
        %v1613 = vpop.f32.mrf.mxu0
        %1614 = vmatprep.mubr.f32.mxu0 0.0
        %1615 = vmatmul.mubr.f32.gmra.mxu0 %v1284
        %v1616 = vpop.f32.mrf.mxu0
        %v1617 = vadd.f32 %v1375, %v1616
        %v1618 = vpop.f32.mrf.mxu0
        %1619 = vmatprep.mubr.f32.mxu0 0.0
        %1620 = vmatmul.mubr.f32.gmra.mxu0 %v1285
        %v1621 = vpop.f32.mrf.mxu0
        %v1622 = vadd.f32 %v1375, %v1621
        %v1623 = vpop.f32.mrf.mxu0
        %1624 = vmatprep.mubr.f32.mxu0 0.0
        %1625 = vmatmul.mubr.f32.gmra.mxu0 %v1286
        %v1626 = vpop.f32.mrf.mxu0
        %v1627 = vadd.f32 %v1375, %v1626
        %v1628 = vpop.f32.mrf.mxu0
        %1629 = vmatprep.mubr.f32.mxu0 0.0
        %1630 = vmatmul.mubr.f32.gmra.mxu0 %v1287
        %v1631 = vpop.f32.mrf.mxu0
        %v1632 = vadd.f32 %v1375, %v1631
        %v1633 = vpop.f32.mrf.mxu0
        %1634 = vmatprep.mubr.f32.mxu0 0.0
        %1635 = vmatmul.mubr.f32.gmra.mxu0 %v1288
        %v1636 = vpop.f32.mrf.mxu0
        %v1637 = vadd.f32 %v1375, %v1636
        %v1638 = vpop.f32.mrf.mxu0
        %1639 = vmatprep.mubr.f32.mxu0 0.0
        %1640 = vmatmul.mubr.f32.gmra.mxu0 %v1289
        %v1641 = vpop.f32.mrf.mxu0
        %v1642 = vadd.f32 %v1375, %v1641
        %v1643 = vpop.f32.mrf.mxu0
        %1644 = vmatprep.mubr.f32.mxu0 0.0
        %1645 = vmatmul.mubr.f32.gmra.mxu0 %v1290
        %v1646 = vpop.f32.mrf.mxu0
        %v1647 = vadd.f32 %v1375, %v1646
        %v1648 = vpop.f32.mrf.mxu0
        %1649 = vmatprep.mubr.f32.mxu0 0.0
        %1650 = vmatmul.mubr.f32.gmra.mxu0 %v1291
        %v1651 = vpop.f32.mrf.mxu0
        %v1652 = vadd.f32 %v1375, %v1651
        %v1653 = vpop.f32.mrf.mxu0
        %1654 = vmatprep.mubr.f32.mxu0 0.0
        %1655 = vmatmul.mubr.f32.gmra.mxu0 %v1292
        %v1656 = vpop.f32.mrf.mxu0
        %v1657 = vadd.f32 %v1375, %v1656
        %v1658 = vpop.f32.mrf.mxu0
        %1659 = vmatprep.mubr.f32.mxu0 0.0
        %1660 = vmatmul.mubr.f32.gmra.mxu0 %v1293
        %v1661 = vpop.f32.mrf.mxu0
        %v1662 = vadd.f32 %v1375, %v1661
        %v1663 = vpop.f32.mrf.mxu0
        %1664 = vmatprep.mubr.f32.mxu0 0.0
        %1665 = vmatmul.mubr.f32.gmra.mxu0 %v1294
        %v1666 = vpop.f32.mrf.mxu0
        %v1667 = vadd.f32 %v1375, %v1666
        %v1668 = vpop.f32.mrf.mxu0
        %1669 = vmatprep.mubr.f32.mxu0 0.0
        %1670 = vmatmul.mubr.f32.gmra.mxu0 %v1295
        %v1671 = vpop.f32.mrf.mxu0
        %v1672 = vadd.f32 %v1375, %v1671
        %v1673 = vpop.f32.mrf.mxu0
        %1674 = vmatprep.mubr.f32.mxu0 0.0
        %1675 = vmatmul.mubr.f32.gmra.mxu0 %v1296
        %v1676 = vpop.f32.mrf.mxu0
        %v1677 = vadd.f32 %v1375, %v1676
        %v1678 = vpop.f32.mrf.mxu0
        %1679 = vmatprep.mubr.f32.mxu0 0.0
        %1680 = vmatmul.mubr.f32.gmra.mxu0 %v1297
        %v1681 = vpop.f32.mrf.mxu0
        %v1682 = vadd.f32 %v1375, %v1681
        %v1683 = vpop.f32.mrf.mxu0
        %1684 = vdwg.mxu0
        %v1685 = vxor.u32 %v1446, 2147483648
        %v1686 = vxor.u32 %v1452, 2147483648
        %v1687 = vxor.u32 %v1458, 2147483648
        %v1688 = vxor.u32 %v1464, 2147483648
        %v1689 = vxor.u32 %v1470, 2147483648
        %v1690 = vxor.u32 %v1476, 2147483648
        %v1691 = vxor.u32 %v1482, 2147483648
        %v1692 = vxor.u32 %v1488, 2147483648
        %v1693 = vxor.u32 %v1494, 2147483648
        %v1694 = vxor.u32 %v1500, 2147483648
        %v1695 = vxor.u32 %v1506, 2147483648
        %v1696 = vxor.u32 %v1512, 2147483648
        %v1697 = vxor.u32 %v1518, 2147483648
        %v1698 = vxor.u32 %v1524, 2147483648
        %v1699 = vxor.u32 %v1530, 2147483648
        %v1700 = vxor.u32 %v1536, 2147483648
        %v1701 = vmul.f32 %v1685, 1.442695
        %v1702 = vpow.pop %v1701
        %v1703 = vmul.f32 %v1686, 1.442695
        %v1704 = vpow.pop %v1703
        %v1705 = vmul.f32 %v1687, 1.442695
        %v1706 = vpow.pop %v1705
        %v1707 = vmul.f32 %v1688, 1.442695
        %v1708 = vpow.pop %v1707
        %v1709 = vmul.f32 %v1689, 1.442695
        %v1710 = vpow.pop %v1709
        %v1711 = vmul.f32 %v1690, 1.442695
        %v1712 = vpow.pop %v1711
        %v1713 = vmul.f32 %v1691, 1.442695
        %v1714 = vpow.pop %v1713
        %v1715 = vmul.f32 %v1692, 1.442695
        %v1716 = vpow.pop %v1715
        %v1717 = vmul.f32 %v1693, 1.442695
        %v1718 = vpow.pop %v1717
        %v1719 = vmul.f32 %v1694, 1.442695
        %v1720 = vpow.pop %v1719
        %v1721 = vmul.f32 %v1695, 1.442695
        %v1722 = vpow.pop %v1721
        %v1723 = vmul.f32 %v1696, 1.442695
        %v1724 = vpow.pop %v1723
        %v1725 = vmul.f32 %v1697, 1.442695
        %v1726 = vpow.pop %v1725
        %v1727 = vmul.f32 %v1698, 1.442695
        %v1728 = vpow.pop %v1727
        %v1729 = vmul.f32 %v1699, 1.442695
        %v1730 = vpow.pop %v1729
        %v1731 = vmul.f32 %v1700, 1.442695
        %v1732 = vpow.pop %v1731
        %v1733 = vadd.f32 %v1702, 1.0
        %v1734 = vadd.f32 %v1704, 1.0
        %v1735 = vadd.f32 %v1706, 1.0
        %v1736 = vadd.f32 %v1708, 1.0
        %v1737 = vadd.f32 %v1710, 1.0
        %v1738 = vadd.f32 %v1712, 1.0
        %v1739 = vadd.f32 %v1714, 1.0
        %v1740 = vadd.f32 %v1716, 1.0
        %v1741 = vadd.f32 %v1718, 1.0
        %v1742 = vadd.f32 %v1720, 1.0
        %v1743 = vadd.f32 %v1722, 1.0
        %v1744 = vadd.f32 %v1724, 1.0
        %v1745 = vadd.f32 %v1726, 1.0
        %v1746 = vadd.f32 %v1728, 1.0
        %v1747 = vadd.f32 %v1730, 1.0
        %v1748 = vadd.f32 %v1732, 1.0
        %v1749 = vrcp.pop %v1733
        %v1750 = vmul.f32 1.0, %v1749
        %v1751 = vrcp.pop %v1734
        %v1752 = vmul.f32 1.0, %v1751
        %v1753 = vrcp.pop %v1735
        %v1754 = vmul.f32 1.0, %v1753
        %v1755 = vrcp.pop %v1736
        %v1756 = vmul.f32 1.0, %v1755
        %v1757 = vrcp.pop %v1737
        %v1758 = vmul.f32 1.0, %v1757
        %v1759 = vrcp.pop %v1738
        %v1760 = vmul.f32 1.0, %v1759
        %v1761 = vrcp.pop %v1739
        %v1762 = vmul.f32 1.0, %v1761
        %v1763 = vrcp.pop %v1740
        %v1764 = vmul.f32 1.0, %v1763
        %v1765 = vrcp.pop %v1741
        %v1766 = vmul.f32 1.0, %v1765
        %v1767 = vrcp.pop %v1742
        %v1768 = vmul.f32 1.0, %v1767
        %v1769 = vrcp.pop %v1743
        %v1770 = vmul.f32 1.0, %v1769
        %v1771 = vrcp.pop %v1744
        %v1772 = vmul.f32 1.0, %v1771
        %v1773 = vrcp.pop %v1745
        %v1774 = vmul.f32 1.0, %v1773
        %v1775 = vrcp.pop %v1746
        %v1776 = vmul.f32 1.0, %v1775
        %v1777 = vrcp.pop %v1747
        %v1778 = vmul.f32 1.0, %v1777
        %v1779 = vrcp.pop %v1748
        %v1780 = vmul.f32 1.0, %v1779
        %v1781 = vxor.u32 %v1448, 2147483648
        %v1782 = vxor.u32 %v1454, 2147483648
        %v1783 = vxor.u32 %v1460, 2147483648
        %v1784 = vxor.u32 %v1466, 2147483648
        %v1785 = vxor.u32 %v1472, 2147483648
        %v1786 = vxor.u32 %v1478, 2147483648
        %v1787 = vxor.u32 %v1484, 2147483648
        %v1788 = vxor.u32 %v1490, 2147483648
        %v1789 = vxor.u32 %v1496, 2147483648
        %v1790 = vxor.u32 %v1502, 2147483648
        %v1791 = vxor.u32 %v1508, 2147483648
        %v1792 = vxor.u32 %v1514, 2147483648
        %v1793 = vxor.u32 %v1520, 2147483648
        %v1794 = vxor.u32 %v1526, 2147483648
        %v1795 = vxor.u32 %v1532, 2147483648
        %v1796 = vxor.u32 %v1538, 2147483648
        %v1797 = vmul.f32 %v1781, 1.442695
        %v1798 = vpow.pop %v1797
        %v1799 = vmul.f32 %v1782, 1.442695
        %v1800 = vpow.pop %v1799
        %v1801 = vmul.f32 %v1783, 1.442695
        %v1802 = vpow.pop %v1801
        %v1803 = vmul.f32 %v1784, 1.442695
        %v1804 = vpow.pop %v1803
        %v1805 = vmul.f32 %v1785, 1.442695
        %v1806 = vpow.pop %v1805
        %v1807 = vmul.f32 %v1786, 1.442695
        %v1808 = vpow.pop %v1807
        %v1809 = vmul.f32 %v1787, 1.442695
        %v1810 = vpow.pop %v1809
        %v1811 = vmul.f32 %v1788, 1.442695
        %v1812 = vpow.pop %v1811
        %v1813 = vmul.f32 %v1789, 1.442695
        %v1814 = vpow.pop %v1813
        %v1815 = vmul.f32 %v1790, 1.442695
        %v1816 = vpow.pop %v1815
        %v1817 = vmul.f32 %v1791, 1.442695
        %v1818 = vpow.pop %v1817
        %v1819 = vmul.f32 %v1792, 1.442695
        %v1820 = vpow.pop %v1819
        %v1821 = vmul.f32 %v1793, 1.442695
        %v1822 = vpow.pop %v1821
        %v1823 = vmul.f32 %v1794, 1.442695
        %v1824 = vpow.pop %v1823
        %v1825 = vmul.f32 %v1795, 1.442695
        %v1826 = vpow.pop %v1825
        %v1827 = vmul.f32 %v1796, 1.442695
        %v1828 = vpow.pop %v1827
        %v1829 = vadd.f32 %v1798, 1.0
        %v1830 = vadd.f32 %v1800, 1.0
        %v1831 = vadd.f32 %v1802, 1.0
        %v1832 = vadd.f32 %v1804, 1.0
        %v1833 = vadd.f32 %v1806, 1.0
        %v1834 = vadd.f32 %v1808, 1.0
        %v1835 = vadd.f32 %v1810, 1.0
        %v1836 = vadd.f32 %v1812, 1.0
        %v1837 = vadd.f32 %v1814, 1.0
        %v1838 = vadd.f32 %v1816, 1.0
        %v1839 = vadd.f32 %v1818, 1.0
        %v1840 = vadd.f32 %v1820, 1.0
        %v1841 = vadd.f32 %v1822, 1.0
        %v1842 = vadd.f32 %v1824, 1.0
        %v1843 = vadd.f32 %v1826, 1.0
        %v1844 = vadd.f32 %v1828, 1.0
        %v1845 = vrcp.pop %v1829
        %v1846 = vmul.f32 1.0, %v1845
        %v1847 = vrcp.pop %v1830
        %v1848 = vmul.f32 1.0, %v1847
        %v1849 = vrcp.pop %v1831
        %v1850 = vmul.f32 1.0, %v1849
        %v1851 = vrcp.pop %v1832
        %v1852 = vmul.f32 1.0, %v1851
        %v1853 = vrcp.pop %v1833
        %v1854 = vmul.f32 1.0, %v1853
        %v1855 = vrcp.pop %v1834
        %v1856 = vmul.f32 1.0, %v1855
        %v1857 = vrcp.pop %v1835
        %v1858 = vmul.f32 1.0, %v1857
        %v1859 = vrcp.pop %v1836
        %v1860 = vmul.f32 1.0, %v1859
        %v1861 = vrcp.pop %v1837
        %v1862 = vmul.f32 1.0, %v1861
        %v1863 = vrcp.pop %v1838
        %v1864 = vmul.f32 1.0, %v1863
        %v1865 = vrcp.pop %v1839
        %v1866 = vmul.f32 1.0, %v1865
        %v1867 = vrcp.pop %v1840
        %v1868 = vmul.f32 1.0, %v1867
        %v1869 = vrcp.pop %v1841
        %v1870 = vmul.f32 1.0, %v1869
        %v1871 = vrcp.pop %v1842
        %v1872 = vmul.f32 1.0, %v1871
        %v1873 = vrcp.pop %v1843
        %v1874 = vmul.f32 1.0, %v1873
        %v1875 = vrcp.pop %v1844
        %v1876 = vmul.f32 1.0, %v1875
        %v1877 = vld [vmem:[%s7] sm:$0x1]
        %v1879 = vlaneseq
        %v1880 = vshrl.u32 %v1879, 7
        %v1881 = vsub.s32 0, %v1880
        %v1882 = vrot.slane %v1877, %v1881
        %v1884 = vmul.f32 %v1750, %v1882
        %v1885 = vmul.f32 %v1752, %v1882
        %v1886 = vmul.f32 %v1754, %v1882
        %v1887 = vmul.f32 %v1756, %v1882
        %v1888 = vmul.f32 %v1758, %v1882
        %v1889 = vmul.f32 %v1760, %v1882
        %v1890 = vmul.f32 %v1762, %v1882
        %v1891 = vmul.f32 %v1764, %v1882
        %v1892 = vmul.f32 %v1766, %v1882
        %v1893 = vmul.f32 %v1768, %v1882
        %v1894 = vmul.f32 %v1770, %v1882
        %v1895 = vmul.f32 %v1772, %v1882
        %v1896 = vmul.f32 %v1774, %v1882
        %v1897 = vmul.f32 %v1776, %v1882
        %v1898 = vmul.f32 %v1778, %v1882
        %v1899 = vmul.f32 %v1780, %v1882
        %v1900 = vadd.f32 %v1607, %v1884
        %v1901 = vadd.f32 %v1612, %v1885
        %v1902 = vadd.f32 %v1617, %v1886
        %v1903 = vadd.f32 %v1622, %v1887
        %v1904 = vadd.f32 %v1627, %v1888
        %v1905 = vadd.f32 %v1632, %v1889
        %v1906 = vadd.f32 %v1637, %v1890
        %v1907 = vadd.f32 %v1642, %v1891
        %v1908 = vadd.f32 %v1647, %v1892
        %v1909 = vadd.f32 %v1652, %v1893
        %v1910 = vadd.f32 %v1657, %v1894
        %v1911 = vadd.f32 %v1662, %v1895
        %v1912 = vadd.f32 %v1667, %v1896
        %v1913 = vadd.f32 %v1672, %v1897
        %v1914 = vadd.f32 %v1677, %v1898
        %v1915 = vadd.f32 %v1682, %v1899
        %v1916 = vtanh.pop %v1900
        %v1917 = vtanh.pop %v1901
        %v1918 = vtanh.pop %v1902
        %v1919 = vtanh.pop %v1903
        %v1920 = vtanh.pop %v1904
        %v1921 = vtanh.pop %v1905
        %v1922 = vtanh.pop %v1906
        %v1923 = vtanh.pop %v1907
        %v1924 = vtanh.pop %v1908
        %v1925 = vtanh.pop %v1909
        %v1926 = vtanh.pop %v1910
        %v1927 = vtanh.pop %v1911
        %v1928 = vtanh.pop %v1912
        %v1929 = vtanh.pop %v1913
        %v1930 = vtanh.pop %v1914
        %v1931 = vtanh.pop %v1915
        %v1932 = vsub.f32 1.0, %v1846
        %v1933 = vsub.f32 1.0, %v1848
        %v1934 = vsub.f32 1.0, %v1850
        %v1935 = vsub.f32 1.0, %v1852
        %v1936 = vsub.f32 1.0, %v1854
        %v1937 = vsub.f32 1.0, %v1856
        %v1938 = vsub.f32 1.0, %v1858
        %v1939 = vsub.f32 1.0, %v1860
        %v1940 = vsub.f32 1.0, %v1862
        %v1941 = vsub.f32 1.0, %v1864
        %v1942 = vsub.f32 1.0, %v1866
        %v1943 = vsub.f32 1.0, %v1868
        %v1944 = vsub.f32 1.0, %v1870
        %v1945 = vsub.f32 1.0, %v1872
        %v1946 = vsub.f32 1.0, %v1874
        %v1947 = vsub.f32 1.0, %v1876
        %v1948 = vmul.f32 %v1932, %v1916
        %v1949 = vmul.f32 %v1933, %v1917
        %v1950 = vmul.f32 %v1934, %v1918
        %v1951 = vmul.f32 %v1935, %v1919
        %v1952 = vmul.f32 %v1936, %v1920
        %v1953 = vmul.f32 %v1937, %v1921
        %v1954 = vmul.f32 %v1938, %v1922
        %v1955 = vmul.f32 %v1939, %v1923
        %v1956 = vmul.f32 %v1940, %v1924
        %v1957 = vmul.f32 %v1941, %v1925
        %v1958 = vmul.f32 %v1942, %v1926
        %v1959 = vmul.f32 %v1943, %v1927
        %v1960 = vmul.f32 %v1944, %v1928
        %v1961 = vmul.f32 %v1945, %v1929
        %v1962 = vmul.f32 %v1946, %v1930
        %v1963 = vmul.f32 %v1947, %v1931
        %1964 = vst [vmem:[%s314 + $0x8] sm:$0xff] %v1948
        %1965 = vst [vmem:[%s314 + $0x18] sm:$0xff] %v1949
        %1966 = vst [vmem:[%s314 + $0x28] sm:$0xff] %v1950
        %1967 = vst [vmem:[%s314 + $0x38] sm:$0xff] %v1951
        %1968 = vst [vmem:[%s314 + $0x48] sm:$0xff] %v1952
        %1969 = vst [vmem:[%s314 + $0x58] sm:$0xff] %v1953
        %1970 = vst [vmem:[%s314 + $0x68] sm:$0xff] %v1954
        %1971 = vst [vmem:[%s314 + $0x78] sm:$0xff] %v1955
        %1972 = vst [vmem:[%s314 + $0x88] sm:$0xff] %v1956
        %1973 = vst [vmem:[%s314 + $0x98] sm:$0xff] %v1957
        %1974 = vst [vmem:[%s314 + $0xa8] sm:$0xff] %v1958
        %1975 = vst [vmem:[%s314 + $0xb8] sm:$0xff] %v1959
        %1976 = vst [vmem:[%s314 + $0xc8] sm:$0xff] %v1960
        %1977 = vst [vmem:[%s314 + $0xd8] sm:$0xff] %v1961
        %1978 = vst [vmem:[%s314 + $0xe8] sm:$0xff] %v1962
        %1979 = vst [vmem:[%s314 + $0xf8] sm:$0xff] %v1963
        %s1980 = sand.u32 %s204, 1
        %s1981 = scalar_lea.sflag [#allocation4], %s1980
        %s1982 = sand.u32 %s204, 1
        %s1983 = smul.addr %s1982, 256
        %s1984 = scalar_lea.vmem [#allocation5], %s1983
        // Predicated region
        $region57: #{tpu_custom_call.1} parent=51 // pred_check
          %p1985 = pneg %p214
        $region58: #{tpu_custom_call.1} parent=51 // pred_check_branch
          %1987 = sbr.rel (%p1985) target = $region60
        $region59: #{tpu_custom_call.1} parent=51 // pred_region
          %s1988 = smul.u32 16, %s23
          %s1990 = ssub.s32 4096, 4096
          %1991 = vsyncadd %s1981, %s1990
          %s1992 = smul.addr %s1988, 2
          %s1993 = smul.addr %s1992, 128
          %s1994 = scalar_lea.hbm %s8, %s1993
          %s1995 = sshll.u32 %s1984, 4
          %s1996 = int_to_ptr.vmem [resolvable:$true] %s1995
          %2001 = dma.vmem_to_hbm [thread:$0]  %s1996, 4096, %s1994, %s1981, 256, 256, 16
        $region60: #{tpu_custom_call.1} parent=51 // pred_fallthru
          _
      $region52: #{tpu_custom_call.1} parent=5 // pred_fallthru
        _
      %p2002 = scmp.le.s32.totalorder 2, %s18
      // Predicated region
      $region61: #{tpu_custom_call.1} parent=5 // pred_check
        %p2003 = pneg %p2002
      $region62: #{tpu_custom_call.1} parent=5 // pred_check_branch
        %2005 = sbr.rel (%p2003) target = $region64
      $region63: #{tpu_custom_call.1} parent=5 // pred_region
        %s2006 = ssub.s32 %s18, 2
        // Predicated region
        $region65: #{tpu_custom_call.1} parent=63 // pred_check
          %p2007 = pneg %p220
        $region66: #{tpu_custom_call.1} parent=63 // pred_check_branch
          %2009 = sbr.rel (%p2007) target = $region68
        $region67: #{tpu_custom_call.1} parent=63 // pred_region
          %s2010 = sand.u32 %s205, 1
          %s2011 = scalar_lea.sflag [#allocation4], %s2010
          %s2012 = sand.u32 %s205, 1
          %s2013 = smul.addr %s2012, 256
          %s2014 = scalar_lea.vmem [#allocation5], %s2013
          %2015 = dma.done %s2011, 4096
        $region68: #{tpu_custom_call.1} parent=63 // pred_fallthru
          _
      $region64: #{tpu_custom_call.1} parent=5 // pred_fallthru
        _
    $region6: #{tpu_custom_call.1} parent=1 // loop_footer
      %s22 = sadd.s32 1, %s18
    $region7: #{tpu_custom_call.1} parent=1 // loop_footer_branch
      %17 = sbr.rel target = $region3
    $region8: #{tpu_custom_call.1} parent=1 // loop_exit
      _
    %2016 = vsyncpa [#allocation3], 1
    %s2017 = scalar_lea.sflag [#allocation3], 1
    %2018 = vsyncpa %s2017, 1
    %2019 = vsyncpa [#allocation4], 1
    %s2020 = scalar_lea.sflag [#allocation4], 1
    %2021 = vsyncpa %s2020, 1

</llo_original>
